<compile_context>
chip_gen: v7x
topology: tpu7x:2x2x1
jax: 0.10.0
libtpu: 0.0.40
codegen_flags: <defaults>
</compile_context>

<pallas_src>
import functools
import math

import jax
import jax.numpy as jnp
import numpy as np
from jax.experimental import pallas as pl
from jax.experimental.pallas import tpu as pltpu


def _mha_kernel(q_ref, k_ref, v_ref,
                wq_ref, wk_ref, wv_ref, wo_ref, vec_ref,
                o_ref,
                *, h, d_k, d_v, eps, matmul_dtype, approx_recip):
    bt, nq, d_model = q_ref.shape
    nk = k_ref.shape[1]
    hdk, hdv = h * d_k, h * d_v
    f32 = jnp.float32

    # Flattened (batch_tile*seq, d_model) slabs.  nq/nk are multiples of 8 at the
    # shapes used here, so these reshapes are free sublane merges.
    xq = q_ref[...].reshape(bt * nq, d_model)          # kept f32 for the residual
    xk = k_ref[...].reshape(bt * nk, d_model)
    xv = v_ref[...].reshape(bt * nk, d_model)

    # Packed small vectors (rows lane-padded to a common width):
    #   0: bq*(1/sqrt(d_k))  1: bk  2: bv  3: bo  4: gamma  5: beta
    bq = vec_ref[0:1, :hdk]
    bk = vec_ref[1:2, :hdk]
    bv = vec_ref[2:3, :hdv]
    bo = vec_ref[3:4, :d_model]
    gamma = vec_ref[4:5, :d_model]
    beta = vec_ref[5:6, :d_model]

    # --- Fused projections: one lane-dense matmul per input, bf16 operands on the
    # MXU, f32 accumulation.  The 1/sqrt(d_k) scale is pre-folded into wq/bq.
    q_all = jnp.dot(xq.astype(matmul_dtype), wq_ref[...],
                    preferred_element_type=f32) + bq   # (bt*nq, h*d_k)
    k_all = jnp.dot(xk.astype(matmul_dtype), wk_ref[...],
                    preferred_element_type=f32) + bk   # (bt*nk, h*d_k)
    v_all = jnp.dot(xv.astype(matmul_dtype), wv_ref[...],
                    preferred_element_type=f32) + bv   # (bt*nk, h*d_v)

    # Head split: static lane slices concatenated along a merged (head*batch)
    # leading axis -> the attention core is a single batched contraction.
    q3 = q_all.reshape(bt, nq, hdk)
    k3 = k_all.reshape(bt, nk, hdk)
    v3 = v_all.reshape(bt, nk, hdv)
    qf = jnp.concatenate([q3[:, :, i * d_k:(i + 1) * d_k] for i in range(h)],
                         axis=0).astype(matmul_dtype)  # (h*bt, nq, d_k)
    kf = jnp.concatenate([k3[:, :, i * d_k:(i + 1) * d_k] for i in range(h)],
                         axis=0).astype(matmul_dtype)  # (h*bt, nk, d_k)
    vf = jnp.concatenate([v3[:, :, i * d_v:(i + 1) * d_v] for i in range(h)],
                         axis=0).astype(matmul_dtype)  # (h*bt, nk, d_v)

    # --- Attention core (scale already folded into Q); softmax stats in f32.
    scores = jnp.einsum('bqd,bkd->bqk', qf, kf,
                        preferred_element_type=f32)    # (h*bt, nq, nk) f32
    m = jnp.max(scores, axis=-1, keepdims=True)
    e = jnp.exp(scores - m)
    denom = jnp.sum(e, axis=-1, keepdims=True)
    if approx_recip:
        p = e * pl.reciprocal(denom, approx=True)      # EUP vrcp slot (~free)
    else:
        p = e / denom                                  # exact-parity path
    ctx = jnp.einsum('bqk,bkd->bqd', p.astype(matmul_dtype), vf,
                     preferred_element_type=f32)       # (h*bt, nq, d_v)

    # --- fc_o(concat_h ctx_h) == sum_h ctx_h @ Wo_h + bo:
    # one batched MXU einsum over all heads, then a major-axis tree sum
    # (no serial out = out + dot chain).
    # TODO(synk): a single K=h*d_v matmul (lane-concat of ctx heads against a
    #             (h*d_v, d_model) Wo) would further improve MXU K-fill.
    ctx_h = ctx.reshape(h, bt * nq, d_v).astype(matmul_dtype)
    out_h = jnp.einsum('hnd,hdm->hnm', ctx_h, wo_ref[...],
                       preferred_element_type=f32)     # (h, bt*nq, d_model)
    out = jnp.sum(out_h, axis=0) + bo                  # (bt*nq, d_model)

    # --- Residual + LayerNorm(d_model), all f32.
    resid = xq + out
    mean = jnp.mean(resid, axis=-1, keepdims=True)
    var = jnp.mean((resid - mean) ** 2, axis=-1, keepdims=True)
    y = (resid - mean) * jax.lax.rsqrt(var + eps) * gamma + beta
    o_ref[...] = y.reshape(bt, nq, d_model).astype(o_ref.dtype)


def _prep_params(params, *, h, d_k, d_v, matmul_dtype):
    """One-time host-side re-layout: fused, pre-transposed, scale-folded weights in
    the MXU operand dtype; small vectors packed into one f32 array.
    PyTorch nn.Linear weight is (out, in)."""
    wq, bq, wk, bk, wv, bv, wo, bo, gamma, beta = params
    d_model = wo.shape[0]
    scale = 1.0 / math.sqrt(d_k)
    wq_all = (wq.T * scale).astype(matmul_dtype)            # (d_model, h*d_k)
    wk_all = wk.T.astype(matmul_dtype)                      # (d_model, h*d_k)
    wv_all = wv.T.astype(matmul_dtype)                      # (d_model, h*d_v)
    wo_h = wo.T.reshape(h, d_v, d_model).astype(matmul_dtype)  # (h, d_v, d_model)

    maxd = max(h * d_k, h * d_v, d_model)

    def padv(v):
        v = v.astype(jnp.float32)
        return jnp.pad(v, (0, maxd - v.shape[0]))

    vecs = jnp.stack([padv(bq * scale), padv(bk), padv(bv),
                      padv(bo), padv(gamma), padv(beta)], axis=0)  # (6, maxd)
    return wq_all, wk_all, wv_all, wo_h, vecs


def _default_vmem_limit_bytes():
    # ~3/4 of physical VMEM: ~96 MiB on v5e/v6e (128 MiB), ~48 MiB on v7x (64 MiB).
    try:
        cap = int(pltpu.get_tpu_info().vmem_capacity_bytes)
        return min((cap * 3) // 4, 112 * 1024 * 1024)
    except Exception:
        return 48 * 1024 * 1024   # safe fallback on every generation (incl. v7x)


def multi_head_attention(queries, keys, values, params, *, h, d_k, d_v,
                         eps=1e-5, batch_tile=8,
                         matmul_dtype=jnp.bfloat16,
                         approx_recip=True,
                         vmem_limit_bytes=None):
    """Eval-mode MultiHeadAttention: LayerNorm(queries + attention output)."""
    b_s, nq, d_model = queries.shape
    nk = keys.shape[1]
    wq_all, wk_all, wv_all, wo_h, vecs = _prep_params(
        params, h=h, d_k=d_k, d_v=d_v, matmul_dtype=matmul_dtype)
    if vmem_limit_bytes is None:
        vmem_limit_bytes = _default_vmem_limit_bytes()

    # Batch tiling: cap the tile so the grid has >= 2 steps -- shards the
    # "parallel" axis across v7x's two TensorCores and gives the BlockSpec
    # pipeline room to hide input/output DMA on every generation.
    # (MXU M-fill target: bt*nq >= 128 on v5e, >= 256 on v6e/v7x, VMEM permitting.)
    bt = max(1, min(batch_tile, pl.cdiv(b_s, 2)))
    pad = (-b_s) % bt
    if pad:
        # Zero rows are numerically safe through softmax/LayerNorm; sliced off below.
        queries = jnp.concatenate(
            [queries, jnp.zeros((pad, nq, d_model), queries.dtype)], axis=0)
        keys = jnp.concatenate(
            [keys, jnp.zeros((pad, nk, d_model), keys.dtype)], axis=0)
        values = jnp.concatenate(
            [values, jnp.zeros((pad, nk, d_model), values.dtype)], axis=0)
    grid_b = (b_s + pad) // bt

    def _invariant(arr):
        # Grid-invariant operand: constant index_map + single-buffered
        # (double-buffering something that never changes is pure VMEM waste).
        return pl.BlockSpec(arr.shape, lambda b: (0,) * arr.ndim,
                            pipeline_mode=pl.Buffered(1))

    kernel = functools.partial(_mha_kernel, h=h, d_k=d_k, d_v=d_v, eps=eps,
                               matmul_dtype=matmul_dtype,
                               approx_recip=approx_recip)

    out = pl.pallas_call(
        kernel,
        out_shape=jax.ShapeDtypeStruct((b_s + pad, nq, d_model), queries.dtype),
        grid_spec=pltpu.PrefetchScalarGridSpec(
            num_scalar_prefetch=0,
            grid=(grid_b,),
            in_specs=[
                pl.BlockSpec((bt, nq, d_model), lambda b: (b, 0, 0)),
                pl.BlockSpec((bt, nk, d_model), lambda b: (b, 0, 0)),
                pl.BlockSpec((bt, nk, d_model), lambda b: (b, 0, 0)),
                _invariant(wq_all), _invariant(wk_all), _invariant(wv_all),
                _invariant(wo_h), _invariant(vecs),
            ],
            out_specs=pl.BlockSpec((bt, nq, d_model), lambda b: (b, 0, 0)),
        ),
        compiler_params=pltpu.CompilerParams(
            dimension_semantics=("parallel",),
            vmem_limit_bytes=int(vmem_limit_bytes),
        ),
    )(queries, keys, values, wq_all, wk_all, wv_all, wo_h, vecs)

    return out[:b_s] if pad else out


def _xavier_uniform(key, shape):
    # PyTorch xavier_uniform_ on a Linear weight (out, in): bound = sqrt(6/(in+out)).
    fan_out, fan_in = shape
    bound = math.sqrt(6.0 / (fan_in + fan_out))
    return jax.random.uniform(key, shape, jnp.float32, -bound, bound)


def init_params(key, d_model, d_k, d_v, h):
    k1, k2, k3, k4 = jax.random.split(key, 4)
    wq = _xavier_uniform(k1, (h * d_k, d_model))
    wk = _xavier_uniform(k2, (h * d_k, d_model))
    wv = _xavier_uniform(k3, (h * d_v, d_model))
    wo = _xavier_uniform(k4, (d_model, h * d_v))
    bq = jnp.zeros((h * d_k,), jnp.float32)
    bk = jnp.zeros((h * d_k,), jnp.float32)
    bv = jnp.zeros((h * d_v,), jnp.float32)
    bo = jnp.zeros((d_model,), jnp.float32)
    gamma = jnp.ones((d_model,), jnp.float32)
    beta = jnp.zeros((d_model,), jnp.float32)
    return (wq, bq, wk, bk, wv, bv, wo, bo, gamma, beta)


def _reference(queries, keys, values, params, *, h, d_k, d_v, eps=1e-5):
    """float64 numpy ground truth of the PyTorch module in eval mode."""
    f64 = np.float64
    q_in, k_in, v_in = (np.asarray(x, f64) for x in (queries, keys, values))
    wq, bq, wk, bk, wv, bv, wo, bo, gamma, beta = (np.asarray(p, f64) for p in params)
    b_s, nq, _ = q_in.shape
    nk = k_in.shape[1]
    q = (q_in @ wq.T + bq).reshape(b_s, nq, h, d_k).transpose(0, 2, 1, 3)
    k = (k_in @ wk.T + bk).reshape(b_s, nk, h, d_k).transpose(0, 2, 3, 1)
    v = (v_in @ wv.T + bv).reshape(b_s, nk, h, d_v).transpose(0, 2, 1, 3)
    att = np.matmul(q, k) / math.sqrt(d_k)
    att = np.exp(att - att.max(-1, keepdims=True))
    att = att / att.sum(-1, keepdims=True)
    out = np.matmul(att, v).transpose(0, 2, 1, 3).reshape(b_s, nq, h * d_v)
    out = out @ wo.T + bo
    resid = q_in + out
    mean = resid.mean(-1, keepdims=True)
    var = ((resid - mean) ** 2).mean(-1, keepdims=True)
    return (resid - mean) / np.sqrt(var + eps) * gamma + beta


if __name__ == "__main__":
    d_model, d_k, d_v, h = 32, 8, 8, 4
    b_s, nq, nk = 2, 8, 8

    key = jax.random.PRNGKey(0)
    kp, kq, kk, kv = jax.random.split(key, 4)
    params = init_params(kp, d_model, d_k, d_v, h)

    queries = jax.random.normal(kq, (b_s, nq, d_model), jnp.float32)
    keys = jax.random.normal(kk, (b_s, nk, d_model), jnp.float32)
    values = jax.random.normal(kv, (b_s, nk, d_model), jnp.float32)

    ref = _reference(queries, keys, values, params, h=h, d_k=d_k, d_v=d_v)

    # Default (production) path: bf16 MXU operands + approx EUP reciprocal.
    out = multi_head_attention(queries, keys, values, params,
                               h=h, d_k=d_k, d_v=d_v)
    out = jax.block_until_ready(out)
    assert out.shape == (b_s, nq, d_model)
    assert np.isfinite(np.asarray(out)).all()
    # bf16 operand rounding (f32 accumulation) dominates the error budget here.
    assert np.allclose(np.asarray(out, np.float64), ref, atol=5e-2, rtol=2e-2), \
        "bf16 kernel mismatch vs float64 reference"

    # Strict-parity path: f32 MXU operands + exact softmax normalization.
    out_f32 = multi_head_attention(queries, keys, values, params,
                                   h=h, d_k=d_k, d_v=d_v,
                                   matmul_dtype=jnp.float32,
                                   approx_recip=False)
    out_f32 = jax.block_until_ready(out_f32)
    assert np.allclose(np.asarray(out_f32, np.float64), ref, atol=1e-2, rtol=1e-2), \
        "f32 kernel mismatch vs float64 reference"

    print("KERNEL_OK")
</pallas_src>

<mosaic_0001>
module attributes {stable_mosaic.version = 11 : i64} {
  func.func @_mha_kernel(%arg0: i32, %arg1: memref<1x8x32xf32, #tpu.memory_space<vmem>>, %arg2: memref<1x8x32xf32, #tpu.memory_space<vmem>>, %arg3: memref<1x8x32xf32, #tpu.memory_space<vmem>>, %arg4: memref<32x32xbf16, #tpu.memory_space<vmem>>, %arg5: memref<32x32xbf16, #tpu.memory_space<vmem>>, %arg6: memref<32x32xbf16, #tpu.memory_space<vmem>>, %arg7: memref<4x8x32xbf16, #tpu.memory_space<vmem>>, %arg8: memref<6x32xf32, #tpu.memory_space<vmem>>, %arg9: memref<1x8x32xf32, #tpu.memory_space<vmem>>) attributes {dimension_semantics = [#tpu.dimension_semantics<parallel>], iteration_bounds = array<i64: 2>, scalar_prefetch = 0 : i64, scratch_operands = 0 : i64, tpu.core_type = #tpu.core_type<tc>, window_params = [{transform_indices = @transform_0, window_bounds = array<i64: 1, 8, 32>}, {transform_indices = @transform_1, window_bounds = array<i64: 1, 8, 32>}, {transform_indices = @transform_2, window_bounds = array<i64: 1, 8, 32>}, {pipeline_mode = #tpu.pipeline_mode<synchronous>, transform_indices = @transform_3, window_bounds = array<i64: 32, 32>}, {pipeline_mode = #tpu.pipeline_mode<synchronous>, transform_indices = @transform_4, window_bounds = array<i64: 32, 32>}, {pipeline_mode = #tpu.pipeline_mode<synchronous>, transform_indices = @transform_5, window_bounds = array<i64: 32, 32>}, {pipeline_mode = #tpu.pipeline_mode<synchronous>, transform_indices = @transform_6, window_bounds = array<i64: 4, 8, 32>}, {pipeline_mode = #tpu.pipeline_mode<synchronous>, transform_indices = @transform_7, window_bounds = array<i64: 6, 32>}, {transform_indices = @transform_8, window_bounds = array<i64: 1, 8, 32>}]} {
    %c0 = arith.constant 0 : index
    %c0_0 = arith.constant 0 : index
    %c0_1 = arith.constant 0 : index
    %0 = vector.load %arg1[%c0, %c0_0, %c0_1] : memref<1x8x32xf32, #tpu.memory_space<vmem>>, vector<1x8x32xf32>
    %1 = vector.shape_cast %0 : vector<1x8x32xf32> to vector<8x32xf32>
    %c0_2 = arith.constant 0 : index
    %c0_3 = arith.constant 0 : index
    %c0_4 = arith.constant 0 : index
    %2 = vector.load %arg2[%c0_2, %c0_3, %c0_4] : memref<1x8x32xf32, #tpu.memory_space<vmem>>, vector<1x8x32xf32>
    %3 = vector.shape_cast %2 : vector<1x8x32xf32> to vector<8x32xf32>
    %c0_5 = arith.constant 0 : index
    %c0_6 = arith.constant 0 : index
    %c0_7 = arith.constant 0 : index
    %4 = vector.load %arg3[%c0_5, %c0_6, %c0_7] : memref<1x8x32xf32, #tpu.memory_space<vmem>>, vector<1x8x32xf32>
    %5 = vector.shape_cast %4 : vector<1x8x32xf32> to vector<8x32xf32>
    %c0_8 = arith.constant 0 : index
    %c0_9 = arith.constant 0 : index
    %6 = vector.load %arg8[%c0_8, %c0_9] : memref<6x32xf32, #tpu.memory_space<vmem>>, vector<1x32xf32>
    %c1 = arith.constant 1 : index
    %c0_10 = arith.constant 0 : index
    %7 = vector.load %arg8[%c1, %c0_10] : memref<6x32xf32, #tpu.memory_space<vmem>>, vector<1x32xf32>
    %c2 = arith.constant 2 : index
    %c0_11 = arith.constant 0 : index
    %8 = vector.load %arg8[%c2, %c0_11] : memref<6x32xf32, #tpu.memory_space<vmem>>, vector<1x32xf32>
    %c3 = arith.constant 3 : index
    %c0_12 = arith.constant 0 : index
    %9 = vector.load %arg8[%c3, %c0_12] : memref<6x32xf32, #tpu.memory_space<vmem>>, vector<1x32xf32>
    %c4 = arith.constant 4 : index
    %c0_13 = arith.constant 0 : index
    %10 = vector.load %arg8[%c4, %c0_13] : memref<6x32xf32, #tpu.memory_space<vmem>>, vector<1x32xf32>
    %c5 = arith.constant 5 : index
    %c0_14 = arith.constant 0 : index
    %11 = vector.load %arg8[%c5, %c0_14] : memref<6x32xf32, #tpu.memory_space<vmem>>, vector<1x32xf32>
    %12 = arith.truncf %1 : vector<8x32xf32> to vector<8x32xbf16>
    %c0_15 = arith.constant 0 : index
    %c0_16 = arith.constant 0 : index
    %13 = vector.load %arg4[%c0_15, %c0_16] : memref<32x32xbf16, #tpu.memory_space<vmem>>, vector<32x32xbf16>
    %cst = arith.constant dense<0.000000e+00> : vector<8x32xf32>
    %14 = tpu.matmul %12, %13, %cst {dimension_numbers = #tpu.dot_dimension_numbers<[1], [0], [0], [1], [0, 0, 1, 1], [], []>} : vector<8x32xbf16>, vector<32x32xbf16>, vector<8x32xf32> -> vector<8x32xf32>
    %15 = vector.broadcast %6 : vector<1x32xf32> to vector<8x32xf32>
    %16 = arith.addf %14, %15 : vector<8x32xf32>
    %17 = arith.truncf %3 : vector<8x32xf32> to vector<8x32xbf16>
    %c0_17 = arith.constant 0 : index
    %c0_18 = arith.constant 0 : index
    %18 = vector.load %arg5[%c0_17, %c0_18] : memref<32x32xbf16, #tpu.memory_space<vmem>>, vector<32x32xbf16>
    %cst_19 = arith.constant dense<0.000000e+00> : vector<8x32xf32>
    %19 = tpu.matmul %17, %18, %cst_19 {dimension_numbers = #tpu.dot_dimension_numbers<[1], [0], [0], [1], [0, 0, 1, 1], [], []>} : vector<8x32xbf16>, vector<32x32xbf16>, vector<8x32xf32> -> vector<8x32xf32>
    %20 = vector.broadcast %7 : vector<1x32xf32> to vector<8x32xf32>
    %21 = arith.addf %19, %20 : vector<8x32xf32>
    %22 = arith.truncf %5 : vector<8x32xf32> to vector<8x32xbf16>
    %c0_20 = arith.constant 0 : index
    %c0_21 = arith.constant 0 : index
    %23 = vector.load %arg6[%c0_20, %c0_21] : memref<32x32xbf16, #tpu.memory_space<vmem>>, vector<32x32xbf16>
    %cst_22 = arith.constant dense<0.000000e+00> : vector<8x32xf32>
    %24 = tpu.matmul %22, %23, %cst_22 {dimension_numbers = #tpu.dot_dimension_numbers<[1], [0], [0], [1], [0, 0, 1, 1], [], []>} : vector<8x32xbf16>, vector<32x32xbf16>, vector<8x32xf32> -> vector<8x32xf32>
    %25 = vector.broadcast %8 : vector<1x32xf32> to vector<8x32xf32>
    %26 = arith.addf %24, %25 : vector<8x32xf32>
    %27 = vector.shape_cast %16 : vector<8x32xf32> to vector<1x8x32xf32>
    %28 = vector.shape_cast %21 : vector<8x32xf32> to vector<1x8x32xf32>
    %29 = vector.shape_cast %26 : vector<8x32xf32> to vector<1x8x32xf32>
    %30 = vector.extract_strided_slice %27 {offsets = [0, 0, 0], sizes = [1, 8, 8], strides = [1, 1, 1]} : vector<1x8x32xf32> to vector<1x8x8xf32>
    %31 = vector.extract_strided_slice %27 {offsets = [0, 0, 8], sizes = [1, 8, 8], strides = [1, 1, 1]} : vector<1x8x32xf32> to vector<1x8x8xf32>
    %32 = vector.extract_strided_slice %27 {offsets = [0, 0, 16], sizes = [1, 8, 8], strides = [1, 1, 1]} : vector<1x8x32xf32> to vector<1x8x8xf32>
    %33 = vector.extract_strided_slice %27 {offsets = [0, 0, 24], sizes = [1, 8, 8], strides = [1, 1, 1]} : vector<1x8x32xf32> to vector<1x8x8xf32>
    %34 = tpu.concatenate %30, %31, %32, %33 in 0 : vector<1x8x8xf32>, vector<1x8x8xf32>, vector<1x8x8xf32>, vector<1x8x8xf32> -> vector<4x8x8xf32>
    %35 = arith.truncf %34 : vector<4x8x8xf32> to vector<4x8x8xbf16>
    %36 = vector.extract_strided_slice %28 {offsets = [0, 0, 0], sizes = [1, 8, 8], strides = [1, 1, 1]} : vector<1x8x32xf32> to vector<1x8x8xf32>
    %37 = vector.extract_strided_slice %28 {offsets = [0, 0, 8], sizes = [1, 8, 8], strides = [1, 1, 1]} : vector<1x8x32xf32> to vector<1x8x8xf32>
    %38 = vector.extract_strided_slice %28 {offsets = [0, 0, 16], sizes = [1, 8, 8], strides = [1, 1, 1]} : vector<1x8x32xf32> to vector<1x8x8xf32>
    %39 = vector.extract_strided_slice %28 {offsets = [0, 0, 24], sizes = [1, 8, 8], strides = [1, 1, 1]} : vector<1x8x32xf32> to vector<1x8x8xf32>
    %40 = tpu.concatenate %36, %37, %38, %39 in 0 : vector<1x8x8xf32>, vector<1x8x8xf32>, vector<1x8x8xf32>, vector<1x8x8xf32> -> vector<4x8x8xf32>
    %41 = arith.truncf %40 : vector<4x8x8xf32> to vector<4x8x8xbf16>
    %42 = vector.extract_strided_slice %29 {offsets = [0, 0, 0], sizes = [1, 8, 8], strides = [1, 1, 1]} : vector<1x8x32xf32> to vector<1x8x8xf32>
    %43 = vector.extract_strided_slice %29 {offsets = [0, 0, 8], sizes = [1, 8, 8], strides = [1, 1, 1]} : vector<1x8x32xf32> to vector<1x8x8xf32>
    %44 = vector.extract_strided_slice %29 {offsets = [0, 0, 16], sizes = [1, 8, 8], strides = [1, 1, 1]} : vector<1x8x32xf32> to vector<1x8x8xf32>
    %45 = vector.extract_strided_slice %29 {offsets = [0, 0, 24], sizes = [1, 8, 8], strides = [1, 1, 1]} : vector<1x8x32xf32> to vector<1x8x8xf32>
    %46 = tpu.concatenate %42, %43, %44, %45 in 0 : vector<1x8x8xf32>, vector<1x8x8xf32>, vector<1x8x8xf32>, vector<1x8x8xf32> -> vector<4x8x8xf32>
    %47 = arith.truncf %46 : vector<4x8x8xf32> to vector<4x8x8xbf16>
    "tpu.trace_start"() <{level = 10 : i32, message = "bqd,bkd->bqk"}> : () -> ()
    %cst_23 = arith.constant dense<0.000000e+00> : vector<4x8x8xf32>
    %48 = tpu.matmul %35, %41, %cst_23 {dimension_numbers = #tpu.dot_dimension_numbers<[2], [2], [1], [1], [0, 0, 0, 1, 1, 1], [0], [0]>} : vector<4x8x8xbf16>, vector<4x8x8xbf16>, vector<4x8x8xf32> -> vector<4x8x8xf32>
    "tpu.trace_stop"() : () -> ()
    %cst_24 = arith.constant dense<0xFF800000> : vector<4x8xf32>
    %49 = vector.multi_reduction <maximumf>, %48, %cst_24 [2] : vector<4x8x8xf32> to vector<4x8xf32>
    %50 = vector.shape_cast %49 : vector<4x8xf32> to vector<4x8x1xf32>
    %51 = vector.broadcast %50 : vector<4x8x1xf32> to vector<4x8x8xf32>
    %52 = arith.subf %48, %51 : vector<4x8x8xf32>
    %53 = math.exp %52 : vector<4x8x8xf32>
    %cst_25 = arith.constant dense<0.000000e+00> : vector<4x8xf32>
    %54 = vector.multi_reduction <add>, %53, %cst_25 [2] : vector<4x8x8xf32> to vector<4x8xf32>
    %55 = vector.shape_cast %54 : vector<4x8xf32> to vector<4x8x1xf32>
    %56 = tpu.reciprocal %55 {approx = true} : vector<4x8x1xf32> -> vector<4x8x1xf32>
    %57 = vector.broadcast %56 : vector<4x8x1xf32> to vector<4x8x8xf32>
    %58 = arith.mulf %53, %57 : vector<4x8x8xf32>
    %59 = arith.truncf %58 : vector<4x8x8xf32> to vector<4x8x8xbf16>
    "tpu.trace_start"() <{level = 10 : i32, message = "bqk,bkd->bqd"}> : () -> ()
    %cst_26 = arith.constant dense<0.000000e+00> : vector<4x8x8xf32>
    %60 = tpu.matmul %59, %47, %cst_26 {dimension_numbers = #tpu.dot_dimension_numbers<[2], [1], [1], [2], [0, 0, 0, 1, 1, 2], [0], [0]>} : vector<4x8x8xbf16>, vector<4x8x8xbf16>, vector<4x8x8xf32> -> vector<4x8x8xf32>
    "tpu.trace_stop"() : () -> ()
    %61 = arith.truncf %60 : vector<4x8x8xf32> to vector<4x8x8xbf16>
    %c0_27 = arith.constant 0 : index
    %c0_28 = arith.constant 0 : index
    %c0_29 = arith.constant 0 : index
    %62 = vector.load %arg7[%c0_27, %c0_28, %c0_29] : memref<4x8x32xbf16, #tpu.memory_space<vmem>>, vector<4x8x32xbf16>
    "tpu.trace_start"() <{level = 10 : i32, message = "hnd,hdm->hnm"}> : () -> ()
    %cst_30 = arith.constant dense<0.000000e+00> : vector<4x8x32xf32>
    %63 = tpu.matmul %61, %62, %cst_30 {dimension_numbers = #tpu.dot_dimension_numbers<[2], [1], [1], [2], [0, 0, 0, 1, 1, 2], [0], [0]>} : vector<4x8x8xbf16>, vector<4x8x32xbf16>, vector<4x8x32xf32> -> vector<4x8x32xf32>
    "tpu.trace_stop"() : () -> ()
    %cst_31 = arith.constant dense<0.000000e+00> : vector<8x32xf32>
    %64 = vector.multi_reduction <add>, %63, %cst_31 [0] : vector<4x8x32xf32> to vector<8x32xf32>
    %65 = vector.broadcast %9 : vector<1x32xf32> to vector<8x32xf32>
    %66 = arith.addf %64, %65 : vector<8x32xf32>
    %67 = arith.addf %1, %66 : vector<8x32xf32>
    %cst_32 = arith.constant dense<0.000000e+00> : vector<8xf32>
    %68 = vector.multi_reduction <add>, %67, %cst_32 [1] : vector<8x32xf32> to vector<8xf32>
    %69 = vector.shape_cast %68 : vector<8xf32> to vector<8x1xf32>
    %cst_33 = arith.constant 3.200000e+01 : f32
    %70 = vector.broadcast %cst_33 : f32 to vector<8x1xf32>
    %71 = arith.divf %69, %70 : vector<8x1xf32>
    %72 = vector.broadcast %71 : vector<8x1xf32> to vector<8x32xf32>
    %73 = arith.subf %67, %72 : vector<8x32xf32>
    %74 = arith.mulf %73, %73 : vector<8x32xf32>
    %cst_34 = arith.constant dense<0.000000e+00> : vector<8xf32>
    %75 = vector.multi_reduction <add>, %74, %cst_34 [1] : vector<8x32xf32> to vector<8xf32>
    %76 = vector.shape_cast %75 : vector<8xf32> to vector<8x1xf32>
    %cst_35 = arith.constant 3.200000e+01 : f32
    %77 = vector.broadcast %cst_35 : f32 to vector<8x1xf32>
    %78 = arith.divf %76, %77 : vector<8x1xf32>
    %79 = vector.broadcast %71 : vector<8x1xf32> to vector<8x32xf32>
    %80 = arith.subf %67, %79 : vector<8x32xf32>
    %cst_36 = arith.constant 9.99999974E-6 : f32
    %81 = vector.broadcast %cst_36 : f32 to vector<8x1xf32>
    %82 = arith.addf %78, %81 : vector<8x1xf32>
    %83 = math.rsqrt %82 : vector<8x1xf32>
    %84 = vector.broadcast %83 : vector<8x1xf32> to vector<8x32xf32>
    %85 = arith.mulf %80, %84 : vector<8x32xf32>
    %86 = vector.broadcast %10 : vector<1x32xf32> to vector<8x32xf32>
    %87 = arith.mulf %85, %86 : vector<8x32xf32>
    %88 = vector.broadcast %11 : vector<1x32xf32> to vector<8x32xf32>
    %89 = arith.addf %87, %88 : vector<8x32xf32>
    %90 = vector.shape_cast %89 : vector<8x32xf32> to vector<1x8x32xf32>
    %c0_37 = arith.constant 0 : index
    %c0_38 = arith.constant 0 : index
    %c0_39 = arith.constant 0 : index
    %91 = vector.load %arg9[%c0_37, %c0_38, %c0_39] : memref<1x8x32xf32, #tpu.memory_space<vmem>>, vector<1x8x32xf32>
    tpu.vector_store %arg9[%c0_37, %c0_38, %c0_39], %90 {strides = array<i32>} : memref<1x8x32xf32, #tpu.memory_space<vmem>>, vector<1x8x32xf32>,
    return
  }
  func.func @transform_0(%arg0: i32) -> (i32, i32, i32) {
    %c0_i32 = arith.constant 0 : i32
    %c0_i32_0 = arith.constant 0 : i32
    %c0_i32_1 = arith.constant 0 : i32
    return %arg0, %c0_i32, %c0_i32_0 : i32, i32, i32
  }
  func.func @transform_1(%arg0: i32) -> (i32, i32, i32) {
    %c0_i32 = arith.constant 0 : i32
    %c0_i32_0 = arith.constant 0 : i32
    %c0_i32_1 = arith.constant 0 : i32
    return %arg0, %c0_i32, %c0_i32_0 : i32, i32, i32
  }
  func.func @transform_2(%arg0: i32) -> (i32, i32, i32) {
    %c0_i32 = arith.constant 0 : i32
    %c0_i32_0 = arith.constant 0 : i32
    %c0_i32_1 = arith.constant 0 : i32
    return %arg0, %c0_i32, %c0_i32_0 : i32, i32, i32
  }
  func.func @transform_3(%arg0: i32) -> (i32, i32) {
    %c0_i32 = arith.constant 0 : i32
    %c0_i32_0 = arith.constant 0 : i32
    %c0_i32_1 = arith.constant 0 : i32
    return %c0_i32, %c0_i32_0 : i32, i32
  }
  func.func @transform_4(%arg0: i32) -> (i32, i32) {
    %c0_i32 = arith.constant 0 : i32
    %c0_i32_0 = arith.constant 0 : i32
    %c0_i32_1 = arith.constant 0 : i32
    return %c0_i32, %c0_i32_0 : i32, i32
  }
  func.func @transform_5(%arg0: i32) -> (i32, i32) {
    %c0_i32 = arith.constant 0 : i32
    %c0_i32_0 = arith.constant 0 : i32
    %c0_i32_1 = arith.constant 0 : i32
    return %c0_i32, %c0_i32_0 : i32, i32
  }
  func.func @transform_6(%arg0: i32) -> (i32, i32, i32) {
    %c0_i32 = arith.constant 0 : i32
    %c0_i32_0 = arith.constant 0 : i32
    %c0_i32_1 = arith.constant 0 : i32
    %c0_i32_2 = arith.constant 0 : i32
    return %c0_i32, %c0_i32_0, %c0_i32_1 : i32, i32, i32
  }
  func.func @transform_7(%arg0: i32) -> (i32, i32) {
    %c0_i32 = arith.constant 0 : i32
    %c0_i32_0 = arith.constant 0 : i32
    %c0_i32_1 = arith.constant 0 : i32
    return %c0_i32, %c0_i32_0 : i32, i32
  }
  func.func @transform_8(%arg0: i32) -> (i32, i32, i32) {
    %c0_i32 = arith.constant 0 : i32
    %c0_i32_0 = arith.constant 0 : i32
    %c0_i32_1 = arith.constant 0 : i32
    return %arg0, %c0_i32, %c0_i32_0 : i32, i32, i32
  }
}

</mosaic_0001>

<llo_original>
// kernel: tpu_custom_call.1
$region0: #{tpu_custom_call.1}
  #allocation0 [shape = 'u32[]', space=smem, size = 0x4, offset = 0x4, fixed_abs, tag = 'smem constant byte address 0x4 - core index']
  #allocation1 [shape = 'u32[144,128]{1,0:T(1,128)}', space=vmem, size = 0x12000, scoped, tag = 'internal scratch']
  %s0 = inlined_call_operand.hbm [shape: f32[2,8,32], index: 0, kind: input, shape index: {}]
  %s1 = inlined_call_operand.hbm [shape: f32[2,8,32], index: 1, kind: input, shape index: {}]
  %s2 = inlined_call_operand.hbm [shape: f32[2,8,32], index: 2, kind: input, shape index: {}]
  %s3 = inlined_call_operand.hbm [shape: bf16[32,32], index: 3, kind: input, shape index: {}]
  %s4 = inlined_call_operand.hbm [shape: bf16[32,32], index: 4, kind: input, shape index: {}]
  %s5 = inlined_call_operand.vmem [shape: bf16[32,32], index: 5, kind: input, shape index: {}]
  %s6 = inlined_call_operand.hbm [shape: bf16[4,8,32], index: 6, kind: input, shape index: {}]
  %s7 = inlined_call_operand.vmem [shape: f32[6,32], index: 7, kind: input, shape index: {}]
  %s8 = inlined_call_operand.hbm [shape: f32[2,8,32], index: 8, kind: output, shape index: {}]
  %s9 = sld [smem:[#allocation0]]
  $region89: #{tpu_custom_call.1} parent=0
    _
  %s11 = ssub.s32 1, %s9
  %s12 = scalar_select 0, %s11, %s9
  $region1: #{tpu_custom_call.1} parent=0
    #allocation2 [shape = 'u8[8192]{0}', space=vmem, size = 0x2000, scoped, tag = 'input window, operand 0']
    #allocation3 [shape = 's32[2]{0}', space=sflag, size = 0x8, scoped, tag = 'scoped memory for tpu_custom_call.1']
    #allocation4 [shape = 's32[2]{0}', space=sflag, size = 0x8, scoped, tag = 'scoped memory for tpu_custom_call.1']
    #allocation5 [shape = 'u8[8192]{0}', space=vmem, size = 0x2000, scoped, tag = 'input window, operand 1']
    #allocation6 [shape = 's32[2]{0}', space=sflag, size = 0x8, scoped, tag = 'scoped memory for tpu_custom_call.1']
    #allocation7 [shape = 'u8[8192]{0}', space=vmem, size = 0x2000, scoped, tag = 'input window, operand 2']
    #allocation8 [shape = 'u8[8192]{0}', space=vmem, size = 0x2000, scoped, tag = 'input window, operand 3, single buffered']
    #allocation9 [shape = 's32[1]{0}', space=sflag, size = 0x4, scoped, tag = 'scoped memory for tpu_custom_call.1']
    #allocation10 [shape = 'u8[8192]{0}', space=vmem, size = 0x2000, scoped, tag = 'input window, operand 4, single buffered']
    #allocation11 [shape = 'u8[8192]{0}', space=vmem, size = 0x2000, scoped, tag = 'input window, operand 6, single buffered']
    #allocation12 [shape = 's32[1]{0}', space=sflag, size = 0x4, scoped, tag = 'scoped memory for tpu_custom_call.1']
    #allocation13 [shape = 'u8[8192]{0}', space=vmem, size = 0x2000, scoped, tag = 'output window, operand 0']
    %13 = vsyncpa [#allocation3], 0
    %s14 = scalar_lea.sflag [#allocation3], 1
    %15 = vsyncpa %s14, 0
    %16 = vsyncpa [#allocation6], 0
    %s17 = scalar_lea.sflag [#allocation6], 1
    %18 = vsyncpa %s17, 0
    %19 = vsyncpa [#allocation9], 0
    %20 = vsyncpa [#allocation12], 0
    %21 = vsyncpa [#allocation4], 0
    %s22 = scalar_lea.sflag [#allocation4], 1
    %23 = vsyncpa %s22, 0
    loop: start=0, step=1, limit=4
    $region2: #{tpu_custom_call.1} parent=1 // loop_pre_header
      _
    $region3: #{tpu_custom_call.1} parent=1 // loop_header
      %s25 = sphi 0, %s29
      %p26 = scmp.ge.s32.totalorder %s25, 4
      %s35 = sphi 0, %s37
      %s38 = sphi 0, %s35
      %s39 = sphi 0, %s38
      %s55 = sphi 0, %s39
      %s61 = sphi 0, %s63
      %s64 = sphi 0, %s61
      %s65 = sphi 0, %s64
      %s81 = sphi 0, %s65
      %s87 = sphi 0, %s89
      %s90 = sphi 0, %s87
      %s91 = sphi 0, %s90
      %s107 = sphi 0, %s91
      %s111 = sphi 0, %s111
      %s113 = sphi 0, %s111
      %s114 = sphi 0, %s113
      %s128 = sphi 0, %s114
      %s132 = sphi 0, %s132
      %s134 = sphi 0, %s132
      %s135 = sphi 0, %s134
      %s149 = sphi 0, %s135
      %s153 = sphi 0, %s153
      %s155 = sphi 0, %s153
      %s156 = sphi 0, %s155
      %s170 = sphi 0, %s156
      %s174 = sphi 0, %s174
      %s176 = sphi 0, %s174
      %s177 = sphi 0, %s176
      %s191 = sphi 0, %s177
      %s195 = sphi 0, %s195
      %s197 = sphi 0, %s195
      %s198 = sphi 0, %s197
      %s212 = sphi 0, %s198
      %s218 = sphi 0, %s220
      %s221 = sphi 0, %s218
      %s222 = sphi 0, %s221
      %s238 = sphi 0, %s222
    $region4: #{tpu_custom_call.1} parent=1 // loop_header_branch
      %28 = sbr.rel (%p26) target = $region8
    $region5: #{tpu_custom_call.1} parent=1 // loop_body
      %s30 = ssub.s32 %s25, 1
      %s31 = ssub.s32 %s25, 2
      %s32 = sadd.s32 %s25, 1
      %s33 = ssub.s32 %s25, %s32
      %p34 = scmp.eq.s32.totalorder %s33, 0
      %s36 = sadd.s32 %s35, 1
      %s37 = scalar_select %p34, %s35, %s36
      %p40 = pneg %p34
      %p41 = scmp.eq.s32.totalorder %s25, 1
      %p42 = por %p40, %p41
      %p43 = scmp.ne.s32.totalorder %s35, %s38
      %p44 = scmp.eq.s32.totalorder %s25, 0
      %p45 = por %p43, %p44
      %p46 = scmp.ne.s32.totalorder %s35, %s38
      %p47 = scmp.eq.s32.totalorder %s30, 1
      %p48 = por %p46, %p47
      %p49 = scmp.ne.s32.totalorder %s38, %s39
      %p50 = scmp.eq.s32.totalorder %s30, 0
      %p51 = por %p49, %p50
      %p52 = scmp.ne.s32.totalorder %s38, %s39
      %p53 = scmp.eq.s32.totalorder %s31, 1
      %p54 = por %p52, %p53
      %p56 = scmp.ne.s32.totalorder %s39, %s55
      %p57 = scmp.eq.s32.totalorder %s31, 0
      %p58 = por %p56, %p57
      %s59 = ssub.s32 %s25, %s32
      %p60 = scmp.eq.s32.totalorder %s59, 0
      %s62 = sadd.s32 %s61, 1
      %s63 = scalar_select %p60, %s61, %s62
      %p66 = pneg %p60
      %p67 = scmp.eq.s32.totalorder %s25, 1
      %p68 = por %p66, %p67
      %p69 = scmp.ne.s32.totalorder %s61, %s64
      %p70 = scmp.eq.s32.totalorder %s25, 0
      %p71 = por %p69, %p70
      %p72 = scmp.ne.s32.totalorder %s61, %s64
      %p73 = scmp.eq.s32.totalorder %s30, 1
      %p74 = por %p72, %p73
      %p75 = scmp.ne.s32.totalorder %s64, %s65
      %p76 = scmp.eq.s32.totalorder %s30, 0
      %p77 = por %p75, %p76
      %p78 = scmp.ne.s32.totalorder %s64, %s65
      %p79 = scmp.eq.s32.totalorder %s31, 1
      %p80 = por %p78, %p79
      %p82 = scmp.ne.s32.totalorder %s65, %s81
      %p83 = scmp.eq.s32.totalorder %s31, 0
      %p84 = por %p82, %p83
      %s85 = ssub.s32 %s25, %s32
      %p86 = scmp.eq.s32.totalorder %s85, 0
      %s88 = sadd.s32 %s87, 1
      %s89 = scalar_select %p86, %s87, %s88
      %p92 = pneg %p86
      %p93 = scmp.eq.s32.totalorder %s25, 1
      %p94 = por %p92, %p93
      %p95 = scmp.ne.s32.totalorder %s87, %s90
      %p96 = scmp.eq.s32.totalorder %s25, 0
      %p97 = por %p95, %p96
      %p98 = scmp.ne.s32.totalorder %s87, %s90
      %p99 = scmp.eq.s32.totalorder %s30, 1
      %p100 = por %p98, %p99
      %p101 = scmp.ne.s32.totalorder %s90, %s91
      %p102 = scmp.eq.s32.totalorder %s30, 0
      %p103 = por %p101, %p102
      %p104 = scmp.ne.s32.totalorder %s90, %s91
      %p105 = scmp.eq.s32.totalorder %s31, 1
      %p106 = por %p104, %p105
      %p108 = scmp.ne.s32.totalorder %s91, %s107
      %p109 = scmp.eq.s32.totalorder %s31, 0
      %p110 = por %p108, %p109
      %s112 = sadd.s32 %s111, 1
      %p115 = scmp.eq.s32.totalorder %s25, 1
      %p116 = scmp.ne.s32.totalorder %s111, %s113
      %p117 = scmp.eq.s32.totalorder %s25, 0
      %p118 = por %p116, %p117
      %p119 = scmp.ne.s32.totalorder %s111, %s113
      %p120 = scmp.eq.s32.totalorder %s30, 1
      %p121 = por %p119, %p120
      %p122 = scmp.ne.s32.totalorder %s113, %s114
      %p123 = scmp.eq.s32.totalorder %s30, 0
      %p124 = por %p122, %p123
      %p125 = scmp.ne.s32.totalorder %s113, %s114
      %p126 = scmp.eq.s32.totalorder %s31, 1
      %p127 = por %p125, %p126
      %p129 = scmp.ne.s32.totalorder %s114, %s128
      %p130 = scmp.eq.s32.totalorder %s31, 0
      %p131 = por %p129, %p130
      %s133 = sadd.s32 %s132, 1
      %p136 = scmp.eq.s32.totalorder %s25, 1
      %p137 = scmp.ne.s32.totalorder %s132, %s134
      %p138 = scmp.eq.s32.totalorder %s25, 0
      %p139 = por %p137, %p138
      %p140 = scmp.ne.s32.totalorder %s132, %s134
      %p141 = scmp.eq.s32.totalorder %s30, 1
      %p142 = por %p140, %p141
      %p143 = scmp.ne.s32.totalorder %s134, %s135
      %p144 = scmp.eq.s32.totalorder %s30, 0
      %p145 = por %p143, %p144
      %p146 = scmp.ne.s32.totalorder %s134, %s135
      %p147 = scmp.eq.s32.totalorder %s31, 1
      %p148 = por %p146, %p147
      %p150 = scmp.ne.s32.totalorder %s135, %s149
      %p151 = scmp.eq.s32.totalorder %s31, 0
      %p152 = por %p150, %p151
      %s154 = sadd.s32 %s153, 1
      %p157 = scmp.eq.s32.totalorder %s25, 1
      %p158 = scmp.ne.s32.totalorder %s153, %s155
      %p159 = scmp.eq.s32.totalorder %s25, 0
      %p160 = por %p158, %p159
      %p161 = scmp.ne.s32.totalorder %s153, %s155
      %p162 = scmp.eq.s32.totalorder %s30, 1
      %p163 = por %p161, %p162
      %p164 = scmp.ne.s32.totalorder %s155, %s156
      %p165 = scmp.eq.s32.totalorder %s30, 0
      %p166 = por %p164, %p165
      %p167 = scmp.ne.s32.totalorder %s155, %s156
      %p168 = scmp.eq.s32.totalorder %s31, 1
      %p169 = por %p167, %p168
      %p171 = scmp.ne.s32.totalorder %s156, %s170
      %p172 = scmp.eq.s32.totalorder %s31, 0
      %p173 = por %p171, %p172
      %s175 = sadd.s32 %s174, 1
      %p178 = scmp.eq.s32.totalorder %s25, 1
      %p179 = scmp.ne.s32.totalorder %s174, %s176
      %p180 = scmp.eq.s32.totalorder %s25, 0
      %p181 = por %p179, %p180
      %p182 = scmp.ne.s32.totalorder %s174, %s176
      %p183 = scmp.eq.s32.totalorder %s30, 1
      %p184 = por %p182, %p183
      %p185 = scmp.ne.s32.totalorder %s176, %s177
      %p186 = scmp.eq.s32.totalorder %s30, 0
      %p187 = por %p185, %p186
      %p188 = scmp.ne.s32.totalorder %s176, %s177
      %p189 = scmp.eq.s32.totalorder %s31, 1
      %p190 = por %p188, %p189
      %p192 = scmp.ne.s32.totalorder %s177, %s191
      %p193 = scmp.eq.s32.totalorder %s31, 0
      %p194 = por %p192, %p193
      %s196 = sadd.s32 %s195, 1
      %p199 = scmp.eq.s32.totalorder %s25, 1
      %p200 = scmp.ne.s32.totalorder %s195, %s197
      %p201 = scmp.eq.s32.totalorder %s25, 0
      %p202 = por %p200, %p201
      %p203 = scmp.ne.s32.totalorder %s195, %s197
      %p204 = scmp.eq.s32.totalorder %s30, 1
      %p205 = por %p203, %p204
      %p206 = scmp.ne.s32.totalorder %s197, %s198
      %p207 = scmp.eq.s32.totalorder %s30, 0
      %p208 = por %p206, %p207
      %p209 = scmp.ne.s32.totalorder %s197, %s198
      %p210 = scmp.eq.s32.totalorder %s31, 1
      %p211 = por %p209, %p210
      %p213 = scmp.ne.s32.totalorder %s198, %s212
      %p214 = scmp.eq.s32.totalorder %s31, 0
      %p215 = por %p213, %p214
      %s216 = ssub.s32 %s25, %s32
      %p217 = scmp.eq.s32.totalorder %s216, 0
      %s219 = sadd.s32 %s218, 1
      %s220 = scalar_select %p217, %s218, %s219
      %p223 = pneg %p217
      %p224 = scmp.eq.s32.totalorder %s25, 1
      %p225 = por %p223, %p224
      %p226 = scmp.ne.s32.totalorder %s218, %s221
      %p227 = scmp.eq.s32.totalorder %s25, 0
      %p228 = por %p226, %p227
      %p229 = scmp.ne.s32.totalorder %s218, %s221
      %p230 = scmp.eq.s32.totalorder %s30, 1
      %p231 = por %p229, %p230
      %p232 = scmp.ne.s32.totalorder %s221, %s222
      %p233 = scmp.eq.s32.totalorder %s30, 0
      %p234 = por %p232, %p233
      %p235 = scmp.ne.s32.totalorder %s221, %s222
      %p236 = scmp.eq.s32.totalorder %s31, 1
      %p237 = por %p235, %p236
      %p239 = scmp.ne.s32.totalorder %s222, %s238
      %p240 = scmp.eq.s32.totalorder %s31, 0
      %p241 = por %p239, %p240
      %p242 = scmp.le.s32.totalorder 1, %s25
      %p243 = scmp.lt.s32.totalorder %s25, 3
      %p244 = pnand %p242, %p243
      %p245 = pneg %p244
      // Predicated region
      $region9: #{tpu_custom_call.1} parent=5 // pred_check
        _
      $region10: #{tpu_custom_call.1} parent=5 // pred_check_branch
        %247 = sbr.rel (%p244) target = $region12
      $region11: #{tpu_custom_call.1} parent=5 // pred_region
        %s248 = ssub.s32 %s25, 1
        // Predicated region
        $region13: #{tpu_custom_call.1} parent=11 // pred_check
          %p249 = pneg %p124
        $region14: #{tpu_custom_call.1} parent=11 // pred_check_branch
          %251 = sbr.rel (%p249) target = $region16
        $region15: #{tpu_custom_call.1} parent=11 // pred_region
          %s253 = ssub.s32 256, 256
          %254 = vsyncadd [#allocation9], %s253
          %s255 = sshll.u32 [#allocation8], 4
          %s256 = int_to_ptr.vmem [resolvable:$true] %s255
          %261 = dma.hbm_to_vmem [thread:$0]  %s3, 256, %s256, [#allocation9], 64, 64, 4
        $region16: #{tpu_custom_call.1} parent=11 // pred_fallthru
          _
        // Predicated region
        $region17: #{tpu_custom_call.1} parent=11 // pred_check
          %p262 = pneg %p145
        $region18: #{tpu_custom_call.1} parent=11 // pred_check_branch
          %264 = sbr.rel (%p262) target = $region20
        $region19: #{tpu_custom_call.1} parent=11 // pred_region
          %s266 = ssub.s32 256, 256
          %267 = vsyncadd [#allocation9], %s266
          %s268 = sshll.u32 [#allocation10], 4
          %s269 = int_to_ptr.vmem [resolvable:$true] %s268
          %274 = dma.hbm_to_vmem [thread:$0]  %s4, 256, %s269, [#allocation9], 64, 64, 4
        $region20: #{tpu_custom_call.1} parent=11 // pred_fallthru
          _
        // Predicated region
        $region21: #{tpu_custom_call.1} parent=11 // pred_check
          %p275 = pneg %p166
        $region22: #{tpu_custom_call.1} parent=11 // pred_check_branch
          %277 = sbr.rel (%p275) target = $region24
        $region23: #{tpu_custom_call.1} parent=11 // pred_region
          _
        $region24: #{tpu_custom_call.1} parent=11 // pred_fallthru
          _
        // Predicated region
        $region25: #{tpu_custom_call.1} parent=11 // pred_check
          %p278 = pneg %p187
        $region26: #{tpu_custom_call.1} parent=11 // pred_check_branch
          %280 = sbr.rel (%p278) target = $region28
        $region27: #{tpu_custom_call.1} parent=11 // pred_region
          %s282 = ssub.s32 256, 256
          %283 = vsyncadd [#allocation12], %s282
          %s284 = sshll.u32 [#allocation11], 4
          %s285 = int_to_ptr.vmem [resolvable:$true] %s284
          %290 = dma.hbm_to_vmem [thread:$0]  %s6, 256, %s285, [#allocation12], 64, 64, 4
        $region28: #{tpu_custom_call.1} parent=11 // pred_fallthru
          _
        // Predicated region
        $region29: #{tpu_custom_call.1} parent=11 // pred_check
          %p291 = pneg %p208
        $region30: #{tpu_custom_call.1} parent=11 // pred_check_branch
          %293 = sbr.rel (%p291) target = $region32
        $region31: #{tpu_custom_call.1} parent=11 // pred_region
          _
        $region32: #{tpu_custom_call.1} parent=11 // pred_fallthru
          _
      $region12: #{tpu_custom_call.1} parent=5 // pred_fallthru
        _
      %p294 = scmp.lt.s32.totalorder %s25, 2
      // Predicated region
      $region33: #{tpu_custom_call.1} parent=5 // pred_check
        %p295 = pneg %p294
      $region34: #{tpu_custom_call.1} parent=5 // pred_check_branch
        %297 = sbr.rel (%p295) target = $region36
      $region35: #{tpu_custom_call.1} parent=5 // pred_region
        // Predicated region
        $region37: #{tpu_custom_call.1} parent=35 // pred_check
          %p298 = pneg %p45
        $region38: #{tpu_custom_call.1} parent=35 // pred_check_branch
          %300 = sbr.rel (%p298) target = $region40
        $region39: #{tpu_custom_call.1} parent=35 // pred_region
          %s301 = sand.u32 %s35, 1
          %s302 = scalar_lea.sflag [#allocation3], %s301
          %s303 = sand.u32 %s35, 1
          %s304 = smul.addr %s303, 8
          %s305 = scalar_lea.vmem [#allocation2], %s304
          %s307 = ssub.s32 128, 128
          %308 = vsyncadd %s302, %s307
          %s309 = smul.addr %s25, 128
          %s310 = scalar_lea.hbm %s0, %s309
          %s312 = sshll.u32 %s305, 4
          %s313 = int_to_ptr.vmem [resolvable:$true] %s312
          %315 = dma.hbm_to_vmem [thread:$0]  %s310, 128, %s313, %s302
        $region40: #{tpu_custom_call.1} parent=35 // pred_fallthru
          _
        // Predicated region
        $region41: #{tpu_custom_call.1} parent=35 // pred_check
          %p316 = pneg %p71
        $region42: #{tpu_custom_call.1} parent=35 // pred_check_branch
          %318 = sbr.rel (%p316) target = $region44
        $region43: #{tpu_custom_call.1} parent=35 // pred_region
          %s319 = sand.u32 %s25, 1
          %s320 = scalar_lea.sflag [#allocation6], %s319
          %s321 = sand.u32 %s61, 1
          %s322 = smul.addr %s321, 8
          %s323 = scalar_lea.vmem [#allocation5], %s322
          %s325 = ssub.s32 128, 128
          %326 = vsyncadd %s320, %s325
          %s327 = smul.addr %s25, 128
          %s328 = scalar_lea.hbm %s1, %s327
          %s330 = sshll.u32 %s323, 4
          %s331 = int_to_ptr.vmem [resolvable:$true] %s330
          %333 = dma.hbm_to_vmem [thread:$0]  %s328, 128, %s331, %s320
        $region44: #{tpu_custom_call.1} parent=35 // pred_fallthru
          _
        // Predicated region
        $region45: #{tpu_custom_call.1} parent=35 // pred_check
          %p334 = pneg %p97
        $region46: #{tpu_custom_call.1} parent=35 // pred_check_branch
          %336 = sbr.rel (%p334) target = $region48
        $region47: #{tpu_custom_call.1} parent=35 // pred_region
          %s337 = sand.u32 %s25, 1
          %s338 = scalar_lea.sflag [#allocation6], %s337
          %s339 = sand.u32 %s87, 1
          %s340 = smul.addr %s339, 8
          %s341 = scalar_lea.vmem [#allocation7], %s340
          %s343 = ssub.s32 128, 128
          %344 = vsyncadd %s338, %s343
          %s345 = smul.addr %s25, 128
          %s346 = scalar_lea.hbm %s2, %s345
          %s348 = sshll.u32 %s341, 4
          %s349 = int_to_ptr.vmem [resolvable:$true] %s348
          %351 = dma.hbm_to_vmem [thread:$0]  %s346, 128, %s349, %s338
        $region48: #{tpu_custom_call.1} parent=35 // pred_fallthru
          _
      $region36: #{tpu_custom_call.1} parent=5 // pred_fallthru
        _
      %p352 = scmp.le.s32.totalorder 1, %s25
      %p353 = scmp.lt.s32.totalorder %s25, 3
      %p354 = pnand %p352, %p353
      %p355 = pneg %p354
      // Predicated region
      $region49: #{tpu_custom_call.1} parent=5 // pred_check
        _
      $region50: #{tpu_custom_call.1} parent=5 // pred_check_branch
        %357 = sbr.rel (%p354) target = $region52
      $region51: #{tpu_custom_call.1} parent=5 // pred_region
        %s358 = ssub.s32 %s25, 1
        %s359 = sand.u32 %s38, 1
        %s360 = scalar_lea.sflag [#allocation3], %s359
        %s361 = sand.u32 %s38, 1
        %s362 = smul.addr %s361, 8
        %s363 = scalar_lea.vmem [#allocation2], %s362
        // Predicated region
        $region53: #{tpu_custom_call.1} parent=51 // pred_check
          %p364 = pneg %p51
        $region54: #{tpu_custom_call.1} parent=51 // pred_check_branch
          %366 = sbr.rel (%p364) target = $region56
        $region55: #{tpu_custom_call.1} parent=51 // pred_region
          %367 = dma.done %s360, 128
        $region56: #{tpu_custom_call.1} parent=51 // pred_fallthru
          _
        %s368 = sand.u32 %s30, 1
        %s369 = scalar_lea.sflag [#allocation6], %s368
        %s370 = sand.u32 %s64, 1
        %s371 = smul.addr %s370, 8
        %s372 = scalar_lea.vmem [#allocation5], %s371
        // Predicated region
        $region57: #{tpu_custom_call.1} parent=51 // pred_check
          %p373 = pneg %p77
        $region58: #{tpu_custom_call.1} parent=51 // pred_check_branch
          %375 = sbr.rel (%p373) target = $region60
        $region59: #{tpu_custom_call.1} parent=51 // pred_region
          %376 = dma.done %s369, 128
        $region60: #{tpu_custom_call.1} parent=51 // pred_fallthru
          _
        %s377 = sand.u32 %s30, 1
        %s378 = scalar_lea.sflag [#allocation6], %s377
        %s379 = sand.u32 %s90, 1
        %s380 = smul.addr %s379, 8
        %s381 = scalar_lea.vmem [#allocation7], %s380
        // Predicated region
        $region61: #{tpu_custom_call.1} parent=51 // pred_check
          %p382 = pneg %p103
        $region62: #{tpu_custom_call.1} parent=51 // pred_check_branch
          %384 = sbr.rel (%p382) target = $region64
        $region63: #{tpu_custom_call.1} parent=51 // pred_region
          %385 = dma.done %s378, 128
        $region64: #{tpu_custom_call.1} parent=51 // pred_fallthru
          _
        // Predicated region
        $region65: #{tpu_custom_call.1} parent=51 // pred_check
          %p386 = pneg %p124
        $region66: #{tpu_custom_call.1} parent=51 // pred_check_branch
          %388 = sbr.rel (%p386) target = $region68
        $region67: #{tpu_custom_call.1} parent=51 // pred_region
          %389 = dma.done [#allocation9], 256
        $region68: #{tpu_custom_call.1} parent=51 // pred_fallthru
          _
        // Predicated region
        $region69: #{tpu_custom_call.1} parent=51 // pred_check
          %p390 = pneg %p145
        $region70: #{tpu_custom_call.1} parent=51 // pred_check_branch
          %392 = sbr.rel (%p390) target = $region72
        $region71: #{tpu_custom_call.1} parent=51 // pred_region
          %393 = dma.done [#allocation9], 256
        $region72: #{tpu_custom_call.1} parent=51 // pred_fallthru
          _
        // Predicated region
        $region73: #{tpu_custom_call.1} parent=51 // pred_check
          %p394 = pneg %p187
        $region74: #{tpu_custom_call.1} parent=51 // pred_check_branch
          %396 = sbr.rel (%p394) target = $region76
        $region75: #{tpu_custom_call.1} parent=51 // pred_region
          %397 = dma.done [#allocation12], 256
        $region76: #{tpu_custom_call.1} parent=51 // pred_fallthru
          _
        %s398 = sand.u32 %s38, 1
        %s399 = scalar_lea.sflag [#allocation3], %s398
        %s400 = sand.u32 %s38, 1
        %s401 = smul.addr %s400, 8
        %s402 = scalar_lea.vmem [#allocation2], %s401
        %p403 = pneg %p51
        %p404 = pneg %p48
        %s405 = sand.u32 %s30, 1
        %s406 = scalar_lea.sflag [#allocation6], %s405
        %s407 = sand.u32 %s64, 1
        %s408 = smul.addr %s407, 8
        %s409 = scalar_lea.vmem [#allocation5], %s408
        %p410 = pneg %p77
        %p411 = pneg %p74
        %s412 = sand.u32 %s30, 1
        %s413 = scalar_lea.sflag [#allocation6], %s412
        %s414 = sand.u32 %s90, 1
        %s415 = smul.addr %s414, 8
        %s416 = scalar_lea.vmem [#allocation7], %s415
        %p417 = pneg %p103
        %p418 = pneg %p100
        %p419 = pneg %p124
        %p420 = pneg %p121
        %p421 = pneg %p145
        %p422 = pneg %p142
        %p423 = pneg %p166
        %p424 = pneg %p163
        %p425 = pneg %p187
        %p426 = pneg %p184
        %p427 = pneg %p208
        %p428 = pneg %p205
        %p429 = pneg %p234
        %p430 = pneg %p231
        %s431 = sand.u32 %s221, 1
        %s432 = scalar_lea.sflag [#allocation4], %s431
        %s433 = sand.u32 %s221, 1
        %s434 = smul.addr %s433, 8
        %s435 = scalar_lea.vmem [#allocation13], %s434
        %v437 = vld [vmem:[%s363] sm:$0xff]
        %v438 = vld [vmem:[%s372] sm:$0xff]
        %v439 = vld [vmem:[%s381] sm:$0xff]
        %v440 = vld [vmem:[%s7] sm:$0x1]
        %v441 = vld [vmem:[%s7 + $0x1] sm:$0x1]
        %v442 = vld [vmem:[%s7 + $0x2] sm:$0x1]
        %v443 = vld [vmem:[%s7 + $0x3] sm:$0x1]
        %v444 = vld [vmem:[%s7 + $0x4] sm:$0x1]
        %v445 = vld [vmem:[%s7 + $0x5] sm:$0x1]
        %v446 = vpack.c.bf16 %v437, %v437
        %v447 = vld [vmem:[#allocation8] sm:$0xf]
        %v448 = vld [vmem:[#allocation8 + $0x4] sm:$0xf]
        %v449 = vld [vmem:[#allocation8 + $0x8] sm:$0xf]
        %v450 = vld [vmem:[#allocation8 + $0xc] sm:$0xf]
        %v451 = vlaneseq
        %v452 = vshrl.u32 %v451, 7
        %v453 = vsub.s32 0, %v452
        %v454 = vrot.slane %v440, %v453
        %v459 = vunpack.c.l.b16 %v447
        %v460 = vunpack.c.l.b16 %v448
        %v461 = vunpack.c.l.b16 %v449
        %v462 = vunpack.c.l.b16 %v450
        %v463 = vpack.c.b16 %v460, %v459
        %v464 = vpack.c.b16 %v462, %v461
        %vm467 = vcmask 261120
        %v469 = vsel %vm467, %v446, 0
        %471 = vmatprep.subr.bf16.mxu0 0
        %472 = vmatpush1.bf16.msra.mxu0 %v463
        %473 = vmatprep.subr.bf16.mxu0 0
        %474 = vmatpush1.bf16.msra.mxu0 %v464
        %475 = vmatprep.subr.bf16.mxu0 0
        %476 = vmatpush1.bf16.msra.mxu0 0
        %477 = vmatprep.subr.bf16.mxu0 0
        %478 = vmatpush1.bf16.msra.mxu0 0
        %479 = vmatprep.subr.bf16.mxu0 0
        %480 = vmatpush1.bf16.msra.mxu0 0
        %481 = vmatprep.subr.bf16.mxu0 0
        %482 = vmatpush1.bf16.msra.mxu0 0
        %483 = vmatprep.subr.bf16.mxu0 0
        %484 = vmatpush1.bf16.msra.mxu0 0
        %485 = vmatprep.subr.bf16.mxu0 0
        %486 = vmatpush1.bf16.msra.mxu0 0
        %487 = vmatprep.subr.bf16.mxu0 0
        %488 = vmatpush1.bf16.msra.mxu0 0
        %489 = vmatprep.subr.bf16.mxu0 0
        %490 = vmatpush1.bf16.msra.mxu0 0
        %491 = vmatprep.subr.bf16.mxu0 0
        %492 = vmatpush1.bf16.msra.mxu0 0
        %493 = vmatprep.subr.bf16.mxu0 0
        %494 = vmatpush1.bf16.msra.mxu0 0
        %495 = vmatprep.subr.bf16.mxu0 0
        %496 = vmatpush1.bf16.msra.mxu0 0
        %497 = vmatprep.subr.bf16.mxu0 0
        %498 = vmatpush1.bf16.msra.mxu0 0
        %499 = vmatprep.subr.bf16.mxu0 0
        %500 = vmatpush1.bf16.msra.mxu0 0
        %501 = vmatprep.subr.bf16.mxu0 0
        %502 = vmatpush1.bf16.msra.mxu0 0
        %503 = vmatprep.mubr.bf16.mxu0 0
        %504 = vmatmul.mubr.bf16.gmra.mrb[0].mxu0 %v469
        %v505 = vpop.f32.mrb[0].mxu0
        %v506 = vadd.f32 %v454, %v505
        %v507 = vpop.f32.mrb[0].mxu0
        %v508 = vpop.f32.mrb[0].mxu0
        %v509 = vpop.f32.mrb[0].mxu0
        %510 = vdwg.mxu0
        %v511 = vpack.c.bf16 %v438, %v438
        %v512 = vld [vmem:[#allocation10] sm:$0xf]
        %v513 = vld [vmem:[#allocation10 + $0x4] sm:$0xf]
        %v514 = vld [vmem:[#allocation10 + $0x8] sm:$0xf]
        %v515 = vld [vmem:[#allocation10 + $0xc] sm:$0xf]
        %v516 = vlaneseq
        %v517 = vshrl.u32 %v516, 7
        %v518 = vsub.s32 0, %v517
        %v519 = vrot.slane %v441, %v518
        %v524 = vunpack.c.l.b16 %v512
        %v525 = vunpack.c.l.b16 %v513
        %v526 = vunpack.c.l.b16 %v514
        %v527 = vunpack.c.l.b16 %v515
        %v528 = vpack.c.b16 %v525, %v524
        %v529 = vpack.c.b16 %v527, %v526
        %v533 = vsel %vm467, %v511, 0
        %535 = vmatprep.subr.bf16.mxu0 0
        %536 = vmatpush1.bf16.msra.mxu0 %v528
        %537 = vmatprep.subr.bf16.mxu0 0
        %538 = vmatpush1.bf16.msra.mxu0 %v529
        %539 = vmatprep.subr.bf16.mxu0 0
        %540 = vmatpush1.bf16.msra.mxu0 0
        %541 = vmatprep.subr.bf16.mxu0 0
        %542 = vmatpush1.bf16.msra.mxu0 0
        %543 = vmatprep.subr.bf16.mxu0 0
        %544 = vmatpush1.bf16.msra.mxu0 0
        %545 = vmatprep.subr.bf16.mxu0 0
        %546 = vmatpush1.bf16.msra.mxu0 0
        %547 = vmatprep.subr.bf16.mxu0 0
        %548 = vmatpush1.bf16.msra.mxu0 0
        %549 = vmatprep.subr.bf16.mxu0 0
        %550 = vmatpush1.bf16.msra.mxu0 0
        %551 = vmatprep.subr.bf16.mxu0 0
        %552 = vmatpush1.bf16.msra.mxu0 0
        %553 = vmatprep.subr.bf16.mxu0 0
        %554 = vmatpush1.bf16.msra.mxu0 0
        %555 = vmatprep.subr.bf16.mxu0 0
        %556 = vmatpush1.bf16.msra.mxu0 0
        %557 = vmatprep.subr.bf16.mxu0 0
        %558 = vmatpush1.bf16.msra.mxu0 0
        %559 = vmatprep.subr.bf16.mxu0 0
        %560 = vmatpush1.bf16.msra.mxu0 0
        %561 = vmatprep.subr.bf16.mxu0 0
        %562 = vmatpush1.bf16.msra.mxu0 0
        %563 = vmatprep.subr.bf16.mxu0 0
        %564 = vmatpush1.bf16.msra.mxu0 0
        %565 = vmatprep.subr.bf16.mxu0 0
        %566 = vmatpush1.bf16.msra.mxu0 0
        %567 = vmatprep.mubr.bf16.mxu0 0
        %568 = vmatmul.mubr.bf16.gmra.mrb[0].mxu0 %v533
        %v569 = vpop.f32.mrb[0].mxu0
        %v570 = vadd.f32 %v519, %v569
        %v571 = vpop.f32.mrb[0].mxu0
        %v572 = vpop.f32.mrb[0].mxu0
        %v573 = vpop.f32.mrb[0].mxu0
        %574 = vdwg.mxu0
        %v575 = vpack.c.bf16 %v439, %v439
        %v576 = vld [vmem:[%s5] sm:$0xf]
        %v577 = vld [vmem:[%s5 + $0x4] sm:$0xf]
        %v578 = vld [vmem:[%s5 + $0x8] sm:$0xf]
        %v579 = vld [vmem:[%s5 + $0xc] sm:$0xf]
        %v580 = vlaneseq
        %v581 = vshrl.u32 %v580, 7
        %v582 = vsub.s32 0, %v581
        %v583 = vrot.slane %v442, %v582
        %v588 = vunpack.c.l.b16 %v576
        %v589 = vunpack.c.l.b16 %v577
        %v590 = vunpack.c.l.b16 %v578
        %v591 = vunpack.c.l.b16 %v579
        %v592 = vpack.c.b16 %v589, %v588
        %v593 = vpack.c.b16 %v591, %v590
        %v597 = vsel %vm467, %v575, 0
        %599 = vmatprep.subr.bf16.mxu0 0
        %600 = vmatpush1.bf16.msra.mxu0 %v592
        %601 = vmatprep.subr.bf16.mxu0 0
        %602 = vmatpush1.bf16.msra.mxu0 %v593
        %603 = vmatprep.subr.bf16.mxu0 0
        %604 = vmatpush1.bf16.msra.mxu0 0
        %605 = vmatprep.subr.bf16.mxu0 0
        %606 = vmatpush1.bf16.msra.mxu0 0
        %607 = vmatprep.subr.bf16.mxu0 0
        %608 = vmatpush1.bf16.msra.mxu0 0
        %609 = vmatprep.subr.bf16.mxu0 0
        %610 = vmatpush1.bf16.msra.mxu0 0
        %611 = vmatprep.subr.bf16.mxu0 0
        %612 = vmatpush1.bf16.msra.mxu0 0
        %613 = vmatprep.subr.bf16.mxu0 0
        %614 = vmatpush1.bf16.msra.mxu0 0
        %615 = vmatprep.subr.bf16.mxu0 0
        %616 = vmatpush1.bf16.msra.mxu0 0
        %617 = vmatprep.subr.bf16.mxu0 0
        %618 = vmatpush1.bf16.msra.mxu0 0
        %619 = vmatprep.subr.bf16.mxu0 0
        %620 = vmatpush1.bf16.msra.mxu0 0
        %621 = vmatprep.subr.bf16.mxu0 0
        %622 = vmatpush1.bf16.msra.mxu0 0
        %623 = vmatprep.subr.bf16.mxu0 0
        %624 = vmatpush1.bf16.msra.mxu0 0
        %625 = vmatprep.subr.bf16.mxu0 0
        %626 = vmatpush1.bf16.msra.mxu0 0
        %627 = vmatprep.subr.bf16.mxu0 0
        %628 = vmatpush1.bf16.msra.mxu0 0
        %629 = vmatprep.subr.bf16.mxu0 0
        %630 = vmatpush1.bf16.msra.mxu0 0
        %631 = vmatprep.mubr.bf16.mxu0 0
        %632 = vmatmul.mubr.bf16.gmra.mrb[0].mxu0 %v597
        %v633 = vpop.f32.mrb[0].mxu0
        %v634 = vadd.f32 %v583, %v633
        %v635 = vpop.f32.mrb[0].mxu0
        %v636 = vpop.f32.mrb[0].mxu0
        %v637 = vpop.f32.mrb[0].mxu0
        %638 = vdwg.mxu0
        %640 = vrot.lane.b32.xlu0 %v506, 120
        %v641 = vpop.permute.xlu0 %640
        %643 = vrot.lane.b32.xlu0 %v506, 112
        %v644 = vpop.permute.xlu0 %643
        %646 = vrot.lane.b32.xlu0 %v506, 104
        %v647 = vpop.permute.xlu0 %646
        %v649 = vpack.c.bf16 %v506, %v506
        %v650 = vpack.c.bf16 %v641, %v641
        %v651 = vpack.c.bf16 %v644, %v644
        %v652 = vpack.c.bf16 %v647, %v647
        %654 = vrot.lane.b32.xlu0 %v570, 120
        %v655 = vpop.permute.xlu0 %654
        %657 = vrot.lane.b32.xlu0 %v570, 112
        %v658 = vpop.permute.xlu0 %657
        %660 = vrot.lane.b32.xlu0 %v570, 104
        %v661 = vpop.permute.xlu0 %660
        %v663 = vpack.c.bf16 %v570, %v570
        %v664 = vpack.c.bf16 %v655, %v655
        %v665 = vpack.c.bf16 %v658, %v658
        %v666 = vpack.c.bf16 %v661, %v661
        %668 = vrot.lane.b32.xlu0 %v634, 120
        %v669 = vpop.permute.xlu0 %668
        %671 = vrot.lane.b32.xlu0 %v634, 112
        %v672 = vpop.permute.xlu0 %671
        %674 = vrot.lane.b32.xlu0 %v634, 104
        %v675 = vpop.permute.xlu0 %674
        %v677 = vpack.c.bf16 %v634, %v634
        %v678 = vpack.c.bf16 %v669, %v669
        %v679 = vpack.c.bf16 %v672, %v672
        %v680 = vpack.c.bf16 %v675, %v675
        %vm681 = vcmask 64512
        %v683 = vsel %vm681, %v649, 0
        %v686 = vsel %vm681, %v663, 0
        %688 = vmatprep.subr.bf16.mxu0 0
        %689 = vmatpush1.bf16.xpose.msra.mxu0 %v686
        %690 = vmatprep.subr.bf16.mxu0 0
        %691 = vmatpush1.bf16.xpose.msra.mxu0 0
        %692 = vmatprep.subr.bf16.mxu0 0
        %693 = vmatpush1.bf16.xpose.msra.mxu0 0
        %694 = vmatprep.subr.bf16.mxu0 0
        %695 = vmatpush1.bf16.xpose.msra.mxu0 0
        %696 = vmatprep.subr.bf16.mxu0 0
        %697 = vmatpush1.bf16.xpose.msra.mxu0 0
        %698 = vmatprep.subr.bf16.mxu0 0
        %699 = vmatpush1.bf16.xpose.msra.mxu0 0
        %700 = vmatprep.subr.bf16.mxu0 0
        %701 = vmatpush1.bf16.xpose.msra.mxu0 0
        %702 = vmatprep.subr.bf16.mxu0 0
        %703 = vmatpush1.bf16.xpose.msra.mxu0 0
        %704 = vmatprep.subr.bf16.mxu0 0
        %705 = vmatpush1.bf16.xpose.msra.mxu0 0
        %706 = vmatprep.subr.bf16.mxu0 0
        %707 = vmatpush1.bf16.xpose.msra.mxu0 0
        %708 = vmatprep.subr.bf16.mxu0 0
        %709 = vmatpush1.bf16.xpose.msra.mxu0 0
        %710 = vmatprep.subr.bf16.mxu0 0
        %711 = vmatpush1.bf16.xpose.msra.mxu0 0
        %712 = vmatprep.subr.bf16.mxu0 0
        %713 = vmatpush1.bf16.xpose.msra.mxu0 0
        %714 = vmatprep.subr.bf16.mxu0 0
        %715 = vmatpush1.bf16.xpose.msra.mxu0 0
        %716 = vmatprep.subr.bf16.mxu0 0
        %717 = vmatpush1.bf16.xpose.msra.mxu0 0
        %718 = vmatprep.subr.bf16.mxu0 0
        %719 = vmatpush1.bf16.xpose.msra.mxu0 0
        %720 = vmatprep.mubr.bf16.mxu0 0
        %721 = vmatmul.mubr.bf16.gmra.mrb[0].mxu0 %v683
        %v722 = vpop.f32.mrb[0].mxu0
        %v723 = vadd.f32 0.0, %v722
        %v724 = vpop.f32.mrb[0].mxu0
        %v725 = vpop.f32.mrb[0].mxu0
        %v726 = vpop.f32.mrb[0].mxu0
        %727 = vdwg.mxu0
        %v729 = vsel %vm681, %v650, 0
        %v732 = vsel %vm681, %v664, 0
        %734 = vmatprep.subr.bf16.mxu0 0
        %735 = vmatpush1.bf16.xpose.msra.mxu0 %v732
        %736 = vmatprep.subr.bf16.mxu0 0
        %737 = vmatpush1.bf16.xpose.msra.mxu0 0
        %738 = vmatprep.subr.bf16.mxu0 0
        %739 = vmatpush1.bf16.xpose.msra.mxu0 0
        %740 = vmatprep.subr.bf16.mxu0 0
        %741 = vmatpush1.bf16.xpose.msra.mxu0 0
        %742 = vmatprep.subr.bf16.mxu0 0
        %743 = vmatpush1.bf16.xpose.msra.mxu0 0
        %744 = vmatprep.subr.bf16.mxu0 0
        %745 = vmatpush1.bf16.xpose.msra.mxu0 0
        %746 = vmatprep.subr.bf16.mxu0 0
        %747 = vmatpush1.bf16.xpose.msra.mxu0 0
        %748 = vmatprep.subr.bf16.mxu0 0
        %749 = vmatpush1.bf16.xpose.msra.mxu0 0
        %750 = vmatprep.subr.bf16.mxu0 0
        %751 = vmatpush1.bf16.xpose.msra.mxu0 0
        %752 = vmatprep.subr.bf16.mxu0 0
        %753 = vmatpush1.bf16.xpose.msra.mxu0 0
        %754 = vmatprep.subr.bf16.mxu0 0
        %755 = vmatpush1.bf16.xpose.msra.mxu0 0
        %756 = vmatprep.subr.bf16.mxu0 0
        %757 = vmatpush1.bf16.xpose.msra.mxu0 0
        %758 = vmatprep.subr.bf16.mxu0 0
        %759 = vmatpush1.bf16.xpose.msra.mxu0 0
        %760 = vmatprep.subr.bf16.mxu0 0
        %761 = vmatpush1.bf16.xpose.msra.mxu0 0
        %762 = vmatprep.subr.bf16.mxu0 0
        %763 = vmatpush1.bf16.xpose.msra.mxu0 0
        %764 = vmatprep.subr.bf16.mxu0 0
        %765 = vmatpush1.bf16.xpose.msra.mxu0 0
        %766 = vmatprep.mubr.bf16.mxu0 0
        %767 = vmatmul.mubr.bf16.gmra.mrb[0].mxu0 %v729
        %v768 = vpop.f32.mrb[0].mxu0
        %v769 = vadd.f32 0.0, %v768
        %v770 = vpop.f32.mrb[0].mxu0
        %v771 = vpop.f32.mrb[0].mxu0
        %v772 = vpop.f32.mrb[0].mxu0
        %773 = vdwg.mxu0
        %v775 = vsel %vm681, %v651, 0
        %v778 = vsel %vm681, %v665, 0
        %780 = vmatprep.subr.bf16.mxu0 0
        %781 = vmatpush1.bf16.xpose.msra.mxu0 %v778
        %782 = vmatprep.subr.bf16.mxu0 0
        %783 = vmatpush1.bf16.xpose.msra.mxu0 0
        %784 = vmatprep.subr.bf16.mxu0 0
        %785 = vmatpush1.bf16.xpose.msra.mxu0 0
        %786 = vmatprep.subr.bf16.mxu0 0
        %787 = vmatpush1.bf16.xpose.msra.mxu0 0
        %788 = vmatprep.subr.bf16.mxu0 0
        %789 = vmatpush1.bf16.xpose.msra.mxu0 0
        %790 = vmatprep.subr.bf16.mxu0 0
        %791 = vmatpush1.bf16.xpose.msra.mxu0 0
        %792 = vmatprep.subr.bf16.mxu0 0
        %793 = vmatpush1.bf16.xpose.msra.mxu0 0
        %794 = vmatprep.subr.bf16.mxu0 0
        %795 = vmatpush1.bf16.xpose.msra.mxu0 0
        %796 = vmatprep.subr.bf16.mxu0 0
        %797 = vmatpush1.bf16.xpose.msra.mxu0 0
        %798 = vmatprep.subr.bf16.mxu0 0
        %799 = vmatpush1.bf16.xpose.msra.mxu0 0
        %800 = vmatprep.subr.bf16.mxu0 0
        %801 = vmatpush1.bf16.xpose.msra.mxu0 0
        %802 = vmatprep.subr.bf16.mxu0 0
        %803 = vmatpush1.bf16.xpose.msra.mxu0 0
        %804 = vmatprep.subr.bf16.mxu0 0
        %805 = vmatpush1.bf16.xpose.msra.mxu0 0
        %806 = vmatprep.subr.bf16.mxu0 0
        %807 = vmatpush1.bf16.xpose.msra.mxu0 0
        %808 = vmatprep.subr.bf16.mxu0 0
        %809 = vmatpush1.bf16.xpose.msra.mxu0 0
        %810 = vmatprep.subr.bf16.mxu0 0
        %811 = vmatpush1.bf16.xpose.msra.mxu0 0
        %812 = vmatprep.mubr.bf16.mxu0 0
        %813 = vmatmul.mubr.bf16.gmra.mrb[0].mxu0 %v775
        %v814 = vpop.f32.mrb[0].mxu0
        %v815 = vadd.f32 0.0, %v814
        %v816 = vpop.f32.mrb[0].mxu0
        %v817 = vpop.f32.mrb[0].mxu0
        %v818 = vpop.f32.mrb[0].mxu0
        %819 = vdwg.mxu0
        %v821 = vsel %vm681, %v652, 0
        %v824 = vsel %vm681, %v666, 0
        %826 = vmatprep.subr.bf16.mxu0 0
        %827 = vmatpush1.bf16.xpose.msra.mxu0 %v824
        %828 = vmatprep.subr.bf16.mxu0 0
        %829 = vmatpush1.bf16.xpose.msra.mxu0 0
        %830 = vmatprep.subr.bf16.mxu0 0
        %831 = vmatpush1.bf16.xpose.msra.mxu0 0
        %832 = vmatprep.subr.bf16.mxu0 0
        %833 = vmatpush1.bf16.xpose.msra.mxu0 0
        %834 = vmatprep.subr.bf16.mxu0 0
        %835 = vmatpush1.bf16.xpose.msra.mxu0 0
        %836 = vmatprep.subr.bf16.mxu0 0
        %837 = vmatpush1.bf16.xpose.msra.mxu0 0
        %838 = vmatprep.subr.bf16.mxu0 0
        %839 = vmatpush1.bf16.xpose.msra.mxu0 0
        %840 = vmatprep.subr.bf16.mxu0 0
        %841 = vmatpush1.bf16.xpose.msra.mxu0 0
        %842 = vmatprep.subr.bf16.mxu0 0
        %843 = vmatpush1.bf16.xpose.msra.mxu0 0
        %844 = vmatprep.subr.bf16.mxu0 0
        %845 = vmatpush1.bf16.xpose.msra.mxu0 0
        %846 = vmatprep.subr.bf16.mxu0 0
        %847 = vmatpush1.bf16.xpose.msra.mxu0 0
        %848 = vmatprep.subr.bf16.mxu0 0
        %849 = vmatpush1.bf16.xpose.msra.mxu0 0
        %850 = vmatprep.subr.bf16.mxu0 0
        %851 = vmatpush1.bf16.xpose.msra.mxu0 0
        %852 = vmatprep.subr.bf16.mxu0 0
        %853 = vmatpush1.bf16.xpose.msra.mxu0 0
        %854 = vmatprep.subr.bf16.mxu0 0
        %855 = vmatpush1.bf16.xpose.msra.mxu0 0
        %856 = vmatprep.subr.bf16.mxu0 0
        %857 = vmatpush1.bf16.xpose.msra.mxu0 0
        %858 = vmatprep.mubr.bf16.mxu0 0
        %859 = vmatmul.mubr.bf16.gmra.mrb[0].mxu0 %v821
        %v860 = vpop.f32.mrb[0].mxu0
        %v861 = vadd.f32 0.0, %v860
        %v862 = vpop.f32.mrb[0].mxu0
        %v863 = vpop.f32.mrb[0].mxu0
        %v864 = vpop.f32.mrb[0].mxu0
        %865 = vdwg.mxu0
        %v866 = vsel %vm681, %v723, -inf
        %867 = vmax.xlane.f32.xlu0 %v866
        %v868 = vpop.xlane.xlu0 %867
        %v869 = vsel %vm681, %v769, -inf
        %870 = vmax.xlane.f32.xlu0 %v869
        %v871 = vpop.xlane.xlu0 %870
        %v872 = vsel %vm681, %v815, -inf
        %873 = vmax.xlane.f32.xlu0 %v872
        %v874 = vpop.xlane.xlu0 %873
        %v875 = vsel %vm681, %v861, -inf
        %876 = vmax.xlane.f32.xlu0 %v875
        %v877 = vpop.xlane.xlu0 %876
        %v878 = vsub.f32 %v723, %v868
        %v879 = vsub.f32 %v769, %v871
        %v880 = vsub.f32 %v815, %v874
        %v881 = vsub.f32 %v861, %v877
        %v882 = vmul.f32 %v878, 1.442695
        %v883 = vpow.pop %v882
        %v884 = vmul.f32 %v879, 1.442695
        %v885 = vpow.pop %v884
        %v886 = vmul.f32 %v880, 1.442695
        %v887 = vpow.pop %v886
        %v888 = vmul.f32 %v881, 1.442695
        %v889 = vpow.pop %v888
        %v890 = vsel %vm681, %v883, 0.0
        %891 = vadd.xlane.f32.xlu0 %v890
        %v892 = vpop.xlane.xlu0 %891
        %v893 = vsel %vm681, %v885, 0.0
        %894 = vadd.xlane.f32.xlu0 %v893
        %v895 = vpop.xlane.xlu0 %894
        %v896 = vsel %vm681, %v887, 0.0
        %897 = vadd.xlane.f32.xlu0 %v896
        %v898 = vpop.xlane.xlu0 %897
        %v899 = vsel %vm681, %v889, 0.0
        %900 = vadd.xlane.f32.xlu0 %v899
        %v901 = vpop.xlane.xlu0 %900
        %v902 = vrcp.pop %v892
        %v903 = vrcp.pop %v895
        %v904 = vrcp.pop %v898
        %v905 = vrcp.pop %v901
        %v906 = vmul.f32 %v883, %v902
        %v907 = vmul.f32 %v885, %v903
        %v908 = vmul.f32 %v887, %v904
        %v909 = vmul.f32 %v889, %v905
        %v910 = vpack.c.bf16 %v906, %v906
        %v911 = vpack.c.bf16 %v907, %v907
        %v912 = vpack.c.bf16 %v908, %v908
        %v913 = vpack.c.bf16 %v909, %v909
        %v915 = vsel %vm681, %v910, 0
        %vm917 = vcmask 1043456
        %v919 = vsel %vm917, %v677, 0
        %921 = vmatprep.subr.bf16.mxu0 0
        %922 = vmatpush1.bf16.msra.mxu0 %v919
        %923 = vmatprep.subr.bf16.mxu0 0
        %924 = vmatpush1.bf16.msra.mxu0 0
        %925 = vmatprep.subr.bf16.mxu0 0
        %926 = vmatpush1.bf16.msra.mxu0 0
        %927 = vmatprep.subr.bf16.mxu0 0
        %928 = vmatpush1.bf16.msra.mxu0 0
        %929 = vmatprep.subr.bf16.mxu0 0
        %930 = vmatpush1.bf16.msra.mxu0 0
        %931 = vmatprep.subr.bf16.mxu0 0
        %932 = vmatpush1.bf16.msra.mxu0 0
        %933 = vmatprep.subr.bf16.mxu0 0
        %934 = vmatpush1.bf16.msra.mxu0 0
        %935 = vmatprep.subr.bf16.mxu0 0
        %936 = vmatpush1.bf16.msra.mxu0 0
        %937 = vmatprep.subr.bf16.mxu0 0
        %938 = vmatpush1.bf16.msra.mxu0 0
        %939 = vmatprep.subr.bf16.mxu0 0
        %940 = vmatpush1.bf16.msra.mxu0 0
        %941 = vmatprep.subr.bf16.mxu0 0
        %942 = vmatpush1.bf16.msra.mxu0 0
        %943 = vmatprep.subr.bf16.mxu0 0
        %944 = vmatpush1.bf16.msra.mxu0 0
        %945 = vmatprep.subr.bf16.mxu0 0
        %946 = vmatpush1.bf16.msra.mxu0 0
        %947 = vmatprep.subr.bf16.mxu0 0
        %948 = vmatpush1.bf16.msra.mxu0 0
        %949 = vmatprep.subr.bf16.mxu0 0
        %950 = vmatpush1.bf16.msra.mxu0 0
        %951 = vmatprep.subr.bf16.mxu0 0
        %952 = vmatpush1.bf16.msra.mxu0 0
        %953 = vmatprep.mubr.bf16.mxu0 0
        %954 = vmatmul.mubr.bf16.gmra.mrb[0].mxu0 %v915
        %v955 = vpop.f32.mrb[0].mxu0
        %v956 = vadd.f32 0.0, %v955
        %v957 = vpop.f32.mrb[0].mxu0
        %v958 = vpop.f32.mrb[0].mxu0
        %v959 = vpop.f32.mrb[0].mxu0
        %960 = vdwg.mxu0
        %v962 = vsel %vm681, %v911, 0
        %v965 = vsel %vm917, %v678, 0
        %967 = vmatprep.subr.bf16.mxu0 0
        %968 = vmatpush1.bf16.msra.mxu0 %v965
        %969 = vmatprep.subr.bf16.mxu0 0
        %970 = vmatpush1.bf16.msra.mxu0 0
        %971 = vmatprep.subr.bf16.mxu0 0
        %972 = vmatpush1.bf16.msra.mxu0 0
        %973 = vmatprep.subr.bf16.mxu0 0
        %974 = vmatpush1.bf16.msra.mxu0 0
        %975 = vmatprep.subr.bf16.mxu0 0
        %976 = vmatpush1.bf16.msra.mxu0 0
        %977 = vmatprep.subr.bf16.mxu0 0
        %978 = vmatpush1.bf16.msra.mxu0 0
        %979 = vmatprep.subr.bf16.mxu0 0
        %980 = vmatpush1.bf16.msra.mxu0 0
        %981 = vmatprep.subr.bf16.mxu0 0
        %982 = vmatpush1.bf16.msra.mxu0 0
        %983 = vmatprep.subr.bf16.mxu0 0
        %984 = vmatpush1.bf16.msra.mxu0 0
        %985 = vmatprep.subr.bf16.mxu0 0
        %986 = vmatpush1.bf16.msra.mxu0 0
        %987 = vmatprep.subr.bf16.mxu0 0
        %988 = vmatpush1.bf16.msra.mxu0 0
        %989 = vmatprep.subr.bf16.mxu0 0
        %990 = vmatpush1.bf16.msra.mxu0 0
        %991 = vmatprep.subr.bf16.mxu0 0
        %992 = vmatpush1.bf16.msra.mxu0 0
        %993 = vmatprep.subr.bf16.mxu0 0
        %994 = vmatpush1.bf16.msra.mxu0 0
        %995 = vmatprep.subr.bf16.mxu0 0
        %996 = vmatpush1.bf16.msra.mxu0 0
        %997 = vmatprep.subr.bf16.mxu0 0
        %998 = vmatpush1.bf16.msra.mxu0 0
        %999 = vmatprep.mubr.bf16.mxu0 0
        %1000 = vmatmul.mubr.bf16.gmra.mrb[0].mxu0 %v962
        %v1001 = vpop.f32.mrb[0].mxu0
        %v1002 = vadd.f32 0.0, %v1001
        %v1003 = vpop.f32.mrb[0].mxu0
        %v1004 = vpop.f32.mrb[0].mxu0
        %v1005 = vpop.f32.mrb[0].mxu0
        %1006 = vdwg.mxu0
        %v1008 = vsel %vm681, %v912, 0
        %v1011 = vsel %vm917, %v679, 0
        %1013 = vmatprep.subr.bf16.mxu0 0
        %1014 = vmatpush1.bf16.msra.mxu0 %v1011
        %1015 = vmatprep.subr.bf16.mxu0 0
        %1016 = vmatpush1.bf16.msra.mxu0 0
        %1017 = vmatprep.subr.bf16.mxu0 0
        %1018 = vmatpush1.bf16.msra.mxu0 0
        %1019 = vmatprep.subr.bf16.mxu0 0
        %1020 = vmatpush1.bf16.msra.mxu0 0
        %1021 = vmatprep.subr.bf16.mxu0 0
        %1022 = vmatpush1.bf16.msra.mxu0 0
        %1023 = vmatprep.subr.bf16.mxu0 0
        %1024 = vmatpush1.bf16.msra.mxu0 0
        %1025 = vmatprep.subr.bf16.mxu0 0
        %1026 = vmatpush1.bf16.msra.mxu0 0
        %1027 = vmatprep.subr.bf16.mxu0 0
        %1028 = vmatpush1.bf16.msra.mxu0 0
        %1029 = vmatprep.subr.bf16.mxu0 0
        %1030 = vmatpush1.bf16.msra.mxu0 0
        %1031 = vmatprep.subr.bf16.mxu0 0
        %1032 = vmatpush1.bf16.msra.mxu0 0
        %1033 = vmatprep.subr.bf16.mxu0 0
        %1034 = vmatpush1.bf16.msra.mxu0 0
        %1035 = vmatprep.subr.bf16.mxu0 0
        %1036 = vmatpush1.bf16.msra.mxu0 0
        %1037 = vmatprep.subr.bf16.mxu0 0
        %1038 = vmatpush1.bf16.msra.mxu0 0
        %1039 = vmatprep.subr.bf16.mxu0 0
        %1040 = vmatpush1.bf16.msra.mxu0 0
        %1041 = vmatprep.subr.bf16.mxu0 0
        %1042 = vmatpush1.bf16.msra.mxu0 0
        %1043 = vmatprep.subr.bf16.mxu0 0
        %1044 = vmatpush1.bf16.msra.mxu0 0
        %1045 = vmatprep.mubr.bf16.mxu0 0
        %1046 = vmatmul.mubr.bf16.gmra.mrb[0].mxu0 %v1008
        %v1047 = vpop.f32.mrb[0].mxu0
        %v1048 = vadd.f32 0.0, %v1047
        %v1049 = vpop.f32.mrb[0].mxu0
        %v1050 = vpop.f32.mrb[0].mxu0
        %v1051 = vpop.f32.mrb[0].mxu0
        %1052 = vdwg.mxu0
        %v1054 = vsel %vm681, %v913, 0
        %v1057 = vsel %vm917, %v680, 0
        %1059 = vmatprep.subr.bf16.mxu0 0
        %1060 = vmatpush1.bf16.msra.mxu0 %v1057
        %1061 = vmatprep.subr.bf16.mxu0 0
        %1062 = vmatpush1.bf16.msra.mxu0 0
        %1063 = vmatprep.subr.bf16.mxu0 0
        %1064 = vmatpush1.bf16.msra.mxu0 0
        %1065 = vmatprep.subr.bf16.mxu0 0
        %1066 = vmatpush1.bf16.msra.mxu0 0
        %1067 = vmatprep.subr.bf16.mxu0 0
        %1068 = vmatpush1.bf16.msra.mxu0 0
        %1069 = vmatprep.subr.bf16.mxu0 0
        %1070 = vmatpush1.bf16.msra.mxu0 0
        %1071 = vmatprep.subr.bf16.mxu0 0
        %1072 = vmatpush1.bf16.msra.mxu0 0
        %1073 = vmatprep.subr.bf16.mxu0 0
        %1074 = vmatpush1.bf16.msra.mxu0 0
        %1075 = vmatprep.subr.bf16.mxu0 0
        %1076 = vmatpush1.bf16.msra.mxu0 0
        %1077 = vmatprep.subr.bf16.mxu0 0
        %1078 = vmatpush1.bf16.msra.mxu0 0
        %1079 = vmatprep.subr.bf16.mxu0 0
        %1080 = vmatpush1.bf16.msra.mxu0 0
        %1081 = vmatprep.subr.bf16.mxu0 0
        %1082 = vmatpush1.bf16.msra.mxu0 0
        %1083 = vmatprep.subr.bf16.mxu0 0
        %1084 = vmatpush1.bf16.msra.mxu0 0
        %1085 = vmatprep.subr.bf16.mxu0 0
        %1086 = vmatpush1.bf16.msra.mxu0 0
        %1087 = vmatprep.subr.bf16.mxu0 0
        %1088 = vmatpush1.bf16.msra.mxu0 0
        %1089 = vmatprep.subr.bf16.mxu0 0
        %1090 = vmatpush1.bf16.msra.mxu0 0
        %1091 = vmatprep.mubr.bf16.mxu0 0
        %1092 = vmatmul.mubr.bf16.gmra.mrb[0].mxu0 %v1054
        %v1093 = vpop.f32.mrb[0].mxu0
        %v1094 = vadd.f32 0.0, %v1093
        %v1095 = vpop.f32.mrb[0].mxu0
        %v1096 = vpop.f32.mrb[0].mxu0
        %v1097 = vpop.f32.mrb[0].mxu0
        %1098 = vdwg.mxu0
        %v1099 = vpack.c.bf16 %v956, %v956
        %v1100 = vpack.c.bf16 %v1002, %v1002
        %v1101 = vpack.c.bf16 %v1048, %v1048
        %v1102 = vpack.c.bf16 %v1094, %v1094
        %v1103 = vld [vmem:[#allocation11] sm:$0xf]
        %v1104 = vld [vmem:[#allocation11 + $0x4] sm:$0xf]
        %v1105 = vld [vmem:[#allocation11 + $0x8] sm:$0xf]
        %v1106 = vld [vmem:[#allocation11 + $0xc] sm:$0xf]
        %v1108 = vsel %vm681, %v1099, 0
        %v1111 = vsel %vm917, %v1103, 0
        %1113 = vmatprep.subr.bf16.mxu0 0
        %1114 = vmatpush1.bf16.msra.mxu0 %v1111
        %1115 = vmatprep.subr.bf16.mxu0 0
        %1116 = vmatpush1.bf16.msra.mxu0 0
        %1117 = vmatprep.subr.bf16.mxu0 0
        %1118 = vmatpush1.bf16.msra.mxu0 0
        %1119 = vmatprep.subr.bf16.mxu0 0
        %1120 = vmatpush1.bf16.msra.mxu0 0
        %1121 = vmatprep.subr.bf16.mxu0 0
        %1122 = vmatpush1.bf16.msra.mxu0 0
        %1123 = vmatprep.subr.bf16.mxu0 0
        %1124 = vmatpush1.bf16.msra.mxu0 0
        %1125 = vmatprep.subr.bf16.mxu0 0
        %1126 = vmatpush1.bf16.msra.mxu0 0
        %1127 = vmatprep.subr.bf16.mxu0 0
        %1128 = vmatpush1.bf16.msra.mxu0 0
        %1129 = vmatprep.subr.bf16.mxu0 0
        %1130 = vmatpush1.bf16.msra.mxu0 0
        %1131 = vmatprep.subr.bf16.mxu0 0
        %1132 = vmatpush1.bf16.msra.mxu0 0
        %1133 = vmatprep.subr.bf16.mxu0 0
        %1134 = vmatpush1.bf16.msra.mxu0 0
        %1135 = vmatprep.subr.bf16.mxu0 0
        %1136 = vmatpush1.bf16.msra.mxu0 0
        %1137 = vmatprep.subr.bf16.mxu0 0
        %1138 = vmatpush1.bf16.msra.mxu0 0
        %1139 = vmatprep.subr.bf16.mxu0 0
        %1140 = vmatpush1.bf16.msra.mxu0 0
        %1141 = vmatprep.subr.bf16.mxu0 0
        %1142 = vmatpush1.bf16.msra.mxu0 0
        %1143 = vmatprep.subr.bf16.mxu0 0
        %1144 = vmatpush1.bf16.msra.mxu0 0
        %1145 = vmatprep.mubr.bf16.mxu0 0
        %1146 = vmatmul.mubr.bf16.gmra.mrb[0].mxu0 %v1108
        %v1147 = vpop.f32.mrb[0].mxu0
        %v1148 = vadd.f32 0.0, %v1147
        %v1149 = vpop.f32.mrb[0].mxu0
        %v1150 = vpop.f32.mrb[0].mxu0
        %v1151 = vpop.f32.mrb[0].mxu0
        %1152 = vdwg.mxu0
        %v1154 = vsel %vm681, %v1100, 0
        %v1157 = vsel %vm917, %v1104, 0
        %1159 = vmatprep.subr.bf16.mxu0 0
        %1160 = vmatpush1.bf16.msra.mxu0 %v1157
        %1161 = vmatprep.subr.bf16.mxu0 0
        %1162 = vmatpush1.bf16.msra.mxu0 0
        %1163 = vmatprep.subr.bf16.mxu0 0
        %1164 = vmatpush1.bf16.msra.mxu0 0
        %1165 = vmatprep.subr.bf16.mxu0 0
        %1166 = vmatpush1.bf16.msra.mxu0 0
        %1167 = vmatprep.subr.bf16.mxu0 0
        %1168 = vmatpush1.bf16.msra.mxu0 0
        %1169 = vmatprep.subr.bf16.mxu0 0
        %1170 = vmatpush1.bf16.msra.mxu0 0
        %1171 = vmatprep.subr.bf16.mxu0 0
        %1172 = vmatpush1.bf16.msra.mxu0 0
        %1173 = vmatprep.subr.bf16.mxu0 0
        %1174 = vmatpush1.bf16.msra.mxu0 0
        %1175 = vmatprep.subr.bf16.mxu0 0
        %1176 = vmatpush1.bf16.msra.mxu0 0
        %1177 = vmatprep.subr.bf16.mxu0 0
        %1178 = vmatpush1.bf16.msra.mxu0 0
        %1179 = vmatprep.subr.bf16.mxu0 0
        %1180 = vmatpush1.bf16.msra.mxu0 0
        %1181 = vmatprep.subr.bf16.mxu0 0
        %1182 = vmatpush1.bf16.msra.mxu0 0
        %1183 = vmatprep.subr.bf16.mxu0 0
        %1184 = vmatpush1.bf16.msra.mxu0 0
        %1185 = vmatprep.subr.bf16.mxu0 0
        %1186 = vmatpush1.bf16.msra.mxu0 0
        %1187 = vmatprep.subr.bf16.mxu0 0
        %1188 = vmatpush1.bf16.msra.mxu0 0
        %1189 = vmatprep.subr.bf16.mxu0 0
        %1190 = vmatpush1.bf16.msra.mxu0 0
        %1191 = vmatprep.mubr.bf16.mxu0 0
        %1192 = vmatmul.mubr.bf16.gmra.mrb[0].mxu0 %v1154
        %v1193 = vpop.f32.mrb[0].mxu0
        %v1194 = vadd.f32 0.0, %v1193
        %v1195 = vpop.f32.mrb[0].mxu0
        %v1196 = vpop.f32.mrb[0].mxu0
        %v1197 = vpop.f32.mrb[0].mxu0
        %1198 = vdwg.mxu0
        %v1200 = vsel %vm681, %v1101, 0
        %v1203 = vsel %vm917, %v1105, 0
        %1205 = vmatprep.subr.bf16.mxu0 0
        %1206 = vmatpush1.bf16.msra.mxu0 %v1203
        %1207 = vmatprep.subr.bf16.mxu0 0
        %1208 = vmatpush1.bf16.msra.mxu0 0
        %1209 = vmatprep.subr.bf16.mxu0 0
        %1210 = vmatpush1.bf16.msra.mxu0 0
        %1211 = vmatprep.subr.bf16.mxu0 0
        %1212 = vmatpush1.bf16.msra.mxu0 0
        %1213 = vmatprep.subr.bf16.mxu0 0
        %1214 = vmatpush1.bf16.msra.mxu0 0
        %1215 = vmatprep.subr.bf16.mxu0 0
        %1216 = vmatpush1.bf16.msra.mxu0 0
        %1217 = vmatprep.subr.bf16.mxu0 0
        %1218 = vmatpush1.bf16.msra.mxu0 0
        %1219 = vmatprep.subr.bf16.mxu0 0
        %1220 = vmatpush1.bf16.msra.mxu0 0
        %1221 = vmatprep.subr.bf16.mxu0 0
        %1222 = vmatpush1.bf16.msra.mxu0 0
        %1223 = vmatprep.subr.bf16.mxu0 0
        %1224 = vmatpush1.bf16.msra.mxu0 0
        %1225 = vmatprep.subr.bf16.mxu0 0
        %1226 = vmatpush1.bf16.msra.mxu0 0
        %1227 = vmatprep.subr.bf16.mxu0 0
        %1228 = vmatpush1.bf16.msra.mxu0 0
        %1229 = vmatprep.subr.bf16.mxu0 0
        %1230 = vmatpush1.bf16.msra.mxu0 0
        %1231 = vmatprep.subr.bf16.mxu0 0
        %1232 = vmatpush1.bf16.msra.mxu0 0
        %1233 = vmatprep.subr.bf16.mxu0 0
        %1234 = vmatpush1.bf16.msra.mxu0 0
        %1235 = vmatprep.subr.bf16.mxu0 0
        %1236 = vmatpush1.bf16.msra.mxu0 0
        %1237 = vmatprep.mubr.bf16.mxu0 0
        %1238 = vmatmul.mubr.bf16.gmra.mrb[0].mxu0 %v1200
        %v1239 = vpop.f32.mrb[0].mxu0
        %v1240 = vadd.f32 0.0, %v1239
        %v1241 = vpop.f32.mrb[0].mxu0
        %v1242 = vpop.f32.mrb[0].mxu0
        %v1243 = vpop.f32.mrb[0].mxu0
        %1244 = vdwg.mxu0
        %v1246 = vsel %vm681, %v1102, 0
        %v1249 = vsel %vm917, %v1106, 0
        %1251 = vmatprep.subr.bf16.mxu0 0
        %1252 = vmatpush1.bf16.msra.mxu0 %v1249
        %1253 = vmatprep.subr.bf16.mxu0 0
        %1254 = vmatpush1.bf16.msra.mxu0 0
        %1255 = vmatprep.subr.bf16.mxu0 0
        %1256 = vmatpush1.bf16.msra.mxu0 0
        %1257 = vmatprep.subr.bf16.mxu0 0
        %1258 = vmatpush1.bf16.msra.mxu0 0
        %1259 = vmatprep.subr.bf16.mxu0 0
        %1260 = vmatpush1.bf16.msra.mxu0 0
        %1261 = vmatprep.subr.bf16.mxu0 0
        %1262 = vmatpush1.bf16.msra.mxu0 0
        %1263 = vmatprep.subr.bf16.mxu0 0
        %1264 = vmatpush1.bf16.msra.mxu0 0
        %1265 = vmatprep.subr.bf16.mxu0 0
        %1266 = vmatpush1.bf16.msra.mxu0 0
        %1267 = vmatprep.subr.bf16.mxu0 0
        %1268 = vmatpush1.bf16.msra.mxu0 0
        %1269 = vmatprep.subr.bf16.mxu0 0
        %1270 = vmatpush1.bf16.msra.mxu0 0
        %1271 = vmatprep.subr.bf16.mxu0 0
        %1272 = vmatpush1.bf16.msra.mxu0 0
        %1273 = vmatprep.subr.bf16.mxu0 0
        %1274 = vmatpush1.bf16.msra.mxu0 0
        %1275 = vmatprep.subr.bf16.mxu0 0
        %1276 = vmatpush1.bf16.msra.mxu0 0
        %1277 = vmatprep.subr.bf16.mxu0 0
        %1278 = vmatpush1.bf16.msra.mxu0 0
        %1279 = vmatprep.subr.bf16.mxu0 0
        %1280 = vmatpush1.bf16.msra.mxu0 0
        %1281 = vmatprep.subr.bf16.mxu0 0
        %1282 = vmatpush1.bf16.msra.mxu0 0
        %1283 = vmatprep.mubr.bf16.mxu0 0
        %1284 = vmatmul.mubr.bf16.gmra.mrb[0].mxu0 %v1246
        %v1285 = vpop.f32.mrb[0].mxu0
        %v1286 = vadd.f32 0.0, %v1285
        %v1287 = vpop.f32.mrb[0].mxu0
        %v1288 = vpop.f32.mrb[0].mxu0
        %v1289 = vpop.f32.mrb[0].mxu0
        %1290 = vdwg.mxu0
        %v1291 = vsel %vm467, %v1148, 0.0
        %v1292 = vsel %vm467, %v1194, 0.0
        %v1293 = vadd.f32 %v1291, %v1292
        %v1294 = vsel %vm467, %v1240, 0.0
        %v1295 = vadd.f32 %v1293, %v1294
        %v1296 = vsel %vm467, %v1286, 0.0
        %v1297 = vadd.f32 %v1295, %v1296
        %v1298 = vlaneseq
        %v1299 = vshrl.u32 %v1298, 7
        %v1300 = vsub.s32 0, %v1299
        %v1301 = vrot.slane %v443, %v1300
        %v1302 = vadd.f32 %v1297, %v1301
        %v1303 = vadd.f32 %v437, %v1302
        %v1304 = vsel %vm467, %v1303, 0.0
        %1305 = vadd.xlane.f32.xlu0 %v1304
        %v1306 = vpop.xlane.xlu0 %1305
        %v1307 = vrcp.pop 32.0
        %v1308 = vmul.f32 %v1306, %v1307
        %v1309 = vsub.f32 %v1303, %v1308
        %v1310 = vmul.f32 %v1309, %v1309
        %v1311 = vsel %vm467, %v1310, 0.0
        %1312 = vadd.xlane.f32.xlu0 %v1311
        %v1313 = vpop.xlane.xlu0 %1312
        %v1314 = vmul.f32 %v1313, %v1307
        %v1315 = vadd.f32 %v1314, 1e-05
        %v1316 = vrsqrt.pop %v1315
        %v1317 = vmul.f32 %v1309, %v1316
        %v1318 = vlaneseq
        %v1319 = vshrl.u32 %v1318, 7
        %v1320 = vsub.s32 0, %v1319
        %v1321 = vrot.slane %v444, %v1320
        %v1322 = vmul.f32 %v1317, %v1321
        %v1323 = vlaneseq
        %v1324 = vshrl.u32 %v1323, 7
        %v1325 = vsub.s32 0, %v1324
        %v1326 = vrot.slane %v445, %v1325
        %v1327 = vadd.f32 %v1322, %v1326
        %1328 = vst.msk [vmem:[%s435] sm:$0xff] %vm467, %v1327
        %s1329 = sand.u32 %s221, 1
        %s1330 = scalar_lea.sflag [#allocation4], %s1329
        %s1331 = sand.u32 %s221, 1
        %s1332 = smul.addr %s1331, 8
        %s1333 = scalar_lea.vmem [#allocation13], %s1332
        // Predicated region
        $region77: #{tpu_custom_call.1} parent=51 // pred_check
          %p1334 = pneg %p231
        $region78: #{tpu_custom_call.1} parent=51 // pred_check_branch
          %1336 = sbr.rel (%p1334) target = $region80
        $region79: #{tpu_custom_call.1} parent=51 // pred_region
          %s1338 = ssub.s32 128, 128
          %1339 = vsyncadd %s1330, %s1338
          %s1340 = smul.addr %s30, 128
          %s1341 = scalar_lea.hbm %s8, %s1340
          %s1343 = sshll.u32 %s1333, 4
          %s1344 = int_to_ptr.vmem [resolvable:$true] %s1343
          %1346 = dma.vmem_to_hbm [thread:$0]  %s1344, 128, %s1341, %s1330
        $region80: #{tpu_custom_call.1} parent=51 // pred_fallthru
          _
      $region52: #{tpu_custom_call.1} parent=5 // pred_fallthru
        _
      %p1347 = scmp.le.s32.totalorder 2, %s25
      // Predicated region
      $region81: #{tpu_custom_call.1} parent=5 // pred_check
        %p1348 = pneg %p1347
      $region82: #{tpu_custom_call.1} parent=5 // pred_check_branch
        %1350 = sbr.rel (%p1348) target = $region84
      $region83: #{tpu_custom_call.1} parent=5 // pred_region
        %s1351 = ssub.s32 %s25, 2
        // Predicated region
        $region85: #{tpu_custom_call.1} parent=83 // pred_check
          %p1352 = pneg %p237
        $region86: #{tpu_custom_call.1} parent=83 // pred_check_branch
          %1354 = sbr.rel (%p1352) target = $region88
        $region87: #{tpu_custom_call.1} parent=83 // pred_region
          %s1355 = sand.u32 %s222, 1
          %s1356 = scalar_lea.sflag [#allocation4], %s1355
          %s1357 = sand.u32 %s222, 1
          %s1358 = smul.addr %s1357, 8
          %s1359 = scalar_lea.vmem [#allocation13], %s1358
          %1360 = dma.done %s1356, 128
        $region88: #{tpu_custom_call.1} parent=83 // pred_fallthru
          _
      $region84: #{tpu_custom_call.1} parent=5 // pred_fallthru
        _
    $region6: #{tpu_custom_call.1} parent=1 // loop_footer
      %s29 = sadd.s32 1, %s25
    $region7: #{tpu_custom_call.1} parent=1 // loop_footer_branch
      %24 = sbr.rel target = $region3
    $region8: #{tpu_custom_call.1} parent=1 // loop_exit
      _
    %1361 = vsyncpa [#allocation3], 1
    %s1362 = scalar_lea.sflag [#allocation3], 1
    %1363 = vsyncpa %s1362, 1
    %1364 = vsyncpa [#allocation6], 1
    %s1365 = scalar_lea.sflag [#allocation6], 1
    %1366 = vsyncpa %s1365, 1
    %1367 = vsyncpa [#allocation9], 1
    %1368 = vsyncpa [#allocation12], 1
    %1369 = vsyncpa [#allocation4], 1
    %s1370 = scalar_lea.sflag [#allocation4], 1
    %1371 = vsyncpa %s1370, 1

</llo_original>
